<compile_context>
chip_gen: v7x
topology: tpu7x:2x2x1
jax: 0.10.0
libtpu: 0.0.40
codegen_flags: <defaults>
</compile_context>

<pallas_src>
import jax
import jax.numpy as jnp
from jax.experimental import pallas as pl
from jax.experimental.pallas import tpu as pltpu


def _round_up(n, m):
    return ((n + m - 1) // m) * m


def _mlp_kernel(x_ref,
                w1_ref, b1_ref,
                w2_ref, b2_ref,
                w3_ref, b3_ref,
                o_ref):
    neg_slope = jnp.float32(0.01)  # torch.nn.LeakyReLU default

    x = x_ref[...]

    # ---- block 1: Linear (BN folded into W/b) -> LeakyReLU -> Dropout(eval: id)
    h = jnp.dot(x.astype(jnp.bfloat16), w1_ref[...],
                preferred_element_type=jnp.float32) + b1_ref[...]
    h = jnp.where(h > 0, h, neg_slope * h)

    # ---- block 2
    h = jnp.dot(h.astype(jnp.bfloat16), w2_ref[...],
                preferred_element_type=jnp.float32) + b2_ref[...]
    h = jnp.where(h > 0, h, neg_slope * h)

    # ---- head: Linear(4F, 1) as a VPU multiply + lane reduction, arranged so
    # the per-row logits land lane-dense as (8, tile_b//8): the sigmoid (EUP)
    # and the output store then touch ~tile_b/1024 vregs instead of tile_b/8
    # sublane-sparse ones, and the store is (near-)unmasked.
    tb, hdim = h.shape
    r = tb // 8
    prod = (h * w3_ref[...]).reshape(8, r, hdim)     # row j of the tile -> (j // r, j % r)
    logit = jnp.sum(prod, axis=-1) + b3_ref[0, 0]    # (8, r), f32
    o_ref[...] = 1.0 / (1.0 + jnp.exp(-logit))       # exact sigmoid (stays in [0, 1])


def neural_network_forward(x, params, *, tile_b=1024):
    """x: (B, F) float32.  Returns (B, 1) float32 in [0, 1] (eval-mode forward)."""
    B, F = x.shape
    eps = 1e-5  # torch.nn.BatchNorm1d default

    def fold_bn(gamma, beta, mean, var):
        scale = gamma / jnp.sqrt(var + eps)
        shift = beta - mean * scale
        return scale, shift

    s1, t1 = fold_bn(params["bn1_gamma"], params["bn1_beta"],
                     params["bn1_mean"], params["bn1_var"])
    s2, t2 = fold_bn(params["bn2_gamma"], params["bn2_beta"],
                     params["bn2_mean"], params["bn2_var"])

    # Fold BN into the Linear layers in f32, then cast matmul weights to bf16.
    w1f = (params["w1"] * s1[None, :]).astype(jnp.bfloat16)
    b1f = (params["b1"] * s1 + t1)[None, :].astype(jnp.float32)
    w2f = (params["w2"] * s2[None, :]).astype(jnp.bfloat16)
    b2f = (params["b2"] * s2 + t2)[None, :].astype(jnp.float32)
    w3_row = params["w3"].reshape(1, -1).astype(jnp.float32)   # (1, 4F) f32, VPU reduce
    b3_sc = params["b3"].reshape(1, 1).astype(jnp.float32)     # (1, 1) SMEM scalar

    H = w1f.shape[1]

    # Batch tile: multiple of 64 keeps the (8, tile_b//8) logit regrouping
    # sublane-aligned; the cdiv(B, 2) clamp guarantees >= 2 grid steps for
    # moderate B so both v7x TensorCores get work (harmless on v5e/v6e).
    tile_b = max(64, min(tile_b, _round_up(pl.cdiv(B, 2), 64)))
    num_blocks = pl.cdiv(B, tile_b)        # last block may be partial (no jnp.pad)
    r = tile_b // 8

    grid_spec = pltpu.PrefetchScalarGridSpec(
        num_scalar_prefetch=0,
        grid=(num_blocks,),
        in_specs=[
            pl.BlockSpec((tile_b, F), lambda i: (i, 0)),       # x: auto double-buffered
            # Weights/biases: constant index_map -> fetched once, VMEM-resident.
            pl.BlockSpec((F, H), lambda i: (0, 0)),
            pl.BlockSpec((1, H), lambda i: (0, 0)),
            pl.BlockSpec((H, H), lambda i: (0, 0)),
            pl.BlockSpec((1, H), lambda i: (0, 0)),
            pl.BlockSpec((1, H), lambda i: (0, 0)),
            pl.BlockSpec((1, 1), lambda i: (0, 0),
                         memory_space=pltpu.MemorySpace.SMEM),  # b3 scalar
        ],
        # Lane-dense output: block (8, tile_b//8); row j of grid step i lives at
        # flat index i*tile_b + j after a row-major reshape.
        out_specs=pl.BlockSpec((8, r), lambda i: (i, 0)),
    )

    # Scoped-VMEM budget: double-buffered x/out blocks, (double-buffered)
    # resident weights, and live f32 temporaries, with headroom.
    need = (2 * tile_b * F * 4                 # x blocks (f32, double-buffered)
            + 2 * 8 * r * 4                    # out blocks
            + 2 * (F * H * 2 + H * H * 2       # bf16 weights (x2 buffers)
                   + 3 * H * 4)                # f32 bias / w3 rows
            + 8 * tile_b * H * 4)              # live activations / casts / prod
    vmem_limit = min(64 * 1024 * 1024, max(32 * 1024 * 1024, int(need * 1.25)))

    out = pl.pallas_call(
        _mlp_kernel,
        out_shape=jax.ShapeDtypeStruct((num_blocks * 8, r), jnp.float32),
        grid_spec=grid_spec,
        compiler_params=pltpu.CompilerParams(
            dimension_semantics=("parallel",),
            vmem_limit_bytes=vmem_limit),
    )(x, w1f, b1f, w2f, b2f, w3_row, b3_sc)

    # Block i, position (s, l) holds batch row i*tile_b + s*r + l, so a
    # row-major flatten restores batch order; garbage tail rows (partial last
    # block) land at indices >= B and are sliced off.
    return out.reshape(-1)[:B].reshape(B, 1)


def init_params(key, input_size):
    """Parameters matching the PyTorch module's shapes.

    Linear: weight/bias ~ U(-1/sqrt(fan_in), 1/sqrt(fan_in)) (PyTorch default),
    stored transposed as (in, out).  BatchNorm uses modest non-identity running
    stats so the BN-folding path is actually exercised.
    """
    H = input_size * 4
    keys = jax.random.split(key, 14)

    def linear(kw, kb, fan_in, fan_out):
        bound = 1.0 / jnp.sqrt(jnp.float32(fan_in))
        w = jax.random.uniform(kw, (fan_in, fan_out), jnp.float32, -bound, bound)
        b = jax.random.uniform(kb, (fan_out,), jnp.float32, -bound, bound)
        return w, b

    w1, b1 = linear(keys[0], keys[1], input_size, H)
    w2, b2 = linear(keys[2], keys[3], H, H)
    w3, b3 = linear(keys[4], keys[5], H, 1)

    def bn_stats(kg, kb, km, kv):
        gamma = jax.random.uniform(kg, (H,), jnp.float32, 0.8, 1.2)
        beta = 0.1 * jax.random.normal(kb, (H,), jnp.float32)
        mean = 0.2 * jax.random.normal(km, (H,), jnp.float32)
        var = jax.random.uniform(kv, (H,), jnp.float32, 0.8, 1.25)
        return gamma, beta, mean, var

    g1, be1, m1, v1 = bn_stats(keys[6], keys[7], keys[8], keys[9])
    g2, be2, m2, v2 = bn_stats(keys[10], keys[11], keys[12], keys[13])

    return {
        "w1": w1, "b1": b1,
        "bn1_gamma": g1, "bn1_beta": be1, "bn1_mean": m1, "bn1_var": v1,
        "w2": w2, "b2": b2,
        "bn2_gamma": g2, "bn2_beta": be2, "bn2_mean": m2, "bn2_var": v2,
        "w3": w3, "b3": b3,
    }


def _reference_forward(x, params):
    """Pure-JAX f32 reference (eval-mode PyTorch semantics) for verification."""
    eps = 1e-5

    def bn(h, g, b, m, v):
        return (h - m) / jnp.sqrt(v + eps) * g + b

    def lrelu(h):
        return jnp.where(h > 0, h, 0.01 * h)

    h = x @ params["w1"] + params["b1"]
    h = lrelu(bn(h, params["bn1_gamma"], params["bn1_beta"],
                 params["bn1_mean"], params["bn1_var"]))
    h = h @ params["w2"] + params["b2"]
    h = lrelu(bn(h, params["bn2_gamma"], params["bn2_beta"],
                 params["bn2_mean"], params["bn2_var"]))
    logit = h @ params["w3"] + params["b3"]
    return jax.nn.sigmoid(logit)


if __name__ == "__main__":
    input_size = 32   # feature dim F; hidden = 4F = 128

    key = jax.random.PRNGKey(0)
    k_params, k_x1, k_x2 = jax.random.split(key, 3)
    params = init_params(k_params, input_size)

    fwd = jax.jit(neural_network_forward)

    # Main check: batch large enough to exercise the multi-block, lane-dense path
    # (tile_b clamps to 256 -> 2 grid steps).
    batch = 512
    x = jax.random.normal(k_x1, (batch, input_size), jnp.float32)
    out = jax.block_until_ready(fwd(x, params))
    ref = _reference_forward(x, params)
    assert out.shape == (batch, 1), out.shape
    assert bool(jnp.all(jnp.isfinite(out)))
    # bf16 matmul weights (f32 accumulation) + exact sigmoid -> small error.
    assert jnp.allclose(out, ref, atol=1e-2, rtol=0.0), float(jnp.max(jnp.abs(out - ref)))

    # Tiny ragged batch: exercises the partial-last-block (no-pad) path.
    batch2 = 5
    x2 = jax.random.normal(k_x2, (batch2, input_size), jnp.float32)
    out2 = jax.block_until_ready(fwd(x2, params))
    ref2 = _reference_forward(x2, params)
    assert out2.shape == (batch2, 1), out2.shape
    assert jnp.allclose(out2, ref2, atol=1e-2, rtol=0.0), float(jnp.max(jnp.abs(out2 - ref2)))

    print("KERNEL_OK")
</pallas_src>

<mosaic_0001>
module attributes {stable_mosaic.version = 11 : i64} {
  func.func @_mlp_kernel(%arg0: i32, %arg1: memref<256x32xf32, #tpu.memory_space<vmem>>, %arg2: memref<32x128xbf16, #tpu.memory_space<vmem>>, %arg3: memref<1x128xf32, #tpu.memory_space<vmem>>, %arg4: memref<128x128xbf16, #tpu.memory_space<vmem>>, %arg5: memref<1x128xf32, #tpu.memory_space<vmem>>, %arg6: memref<1x128xf32, #tpu.memory_space<vmem>>, %arg7: memref<1x1xf32, #tpu.memory_space<smem>>, %arg8: memref<8x32xf32, #tpu.memory_space<vmem>>) attributes {dimension_semantics = [#tpu.dimension_semantics<parallel>], iteration_bounds = array<i64: 2>, scalar_prefetch = 0 : i64, scratch_operands = 0 : i64, tpu.core_type = #tpu.core_type<tc>, window_params = [{transform_indices = @transform_0, window_bounds = array<i64: 256, 32>}, {pipeline_mode = #tpu.pipeline_mode<synchronous>, transform_indices = @transform_1, window_bounds = array<i64: 32, 128>}, {pipeline_mode = #tpu.pipeline_mode<synchronous>, transform_indices = @transform_2, window_bounds = array<i64: 1, 128>}, {pipeline_mode = #tpu.pipeline_mode<synchronous>, transform_indices = @transform_3, window_bounds = array<i64: 128, 128>}, {pipeline_mode = #tpu.pipeline_mode<synchronous>, transform_indices = @transform_4, window_bounds = array<i64: 1, 128>}, {pipeline_mode = #tpu.pipeline_mode<synchronous>, transform_indices = @transform_5, window_bounds = array<i64: 1, 128>}, {transform_indices = @transform_6, window_bounds = array<i64: 1, 1>}, {transform_indices = @transform_7, window_bounds = array<i64: 8, 32>}]} {
    %c0 = arith.constant 0 : index
    %c0_0 = arith.constant 0 : index
    %0 = vector.load %arg1[%c0, %c0_0] : memref<256x32xf32, #tpu.memory_space<vmem>>, vector<256x32xf32>
    %1 = arith.truncf %0 : vector<256x32xf32> to vector<256x32xbf16>
    %c0_1 = arith.constant 0 : index
    %c0_2 = arith.constant 0 : index
    %2 = vector.load %arg2[%c0_1, %c0_2] : memref<32x128xbf16, #tpu.memory_space<vmem>>, vector<32x128xbf16>
    %cst = arith.constant dense<0.000000e+00> : vector<256x128xf32>
    %3 = tpu.matmul %1, %2, %cst {dimension_numbers = #tpu.dot_dimension_numbers<[1], [0], [0], [1], [0, 0, 1, 1], [], []>} : vector<256x32xbf16>, vector<32x128xbf16>, vector<256x128xf32> -> vector<256x128xf32>
    %c0_3 = arith.constant 0 : index
    %c0_4 = arith.constant 0 : index
    %4 = vector.load %arg3[%c0_3, %c0_4] : memref<1x128xf32, #tpu.memory_space<vmem>>, vector<1x128xf32>
    %5 = vector.broadcast %4 : vector<1x128xf32> to vector<256x128xf32>
    %6 = arith.addf %3, %5 : vector<256x128xf32>
    %cst_5 = arith.constant 0.000000e+00 : f32
    %7 = vector.broadcast %cst_5 : f32 to vector<256x128xf32>
    %8 = arith.cmpf ogt, %6, %7 : vector<256x128xf32>
    %cst_6 = arith.constant 0.00999999977 : f32
    %9 = vector.broadcast %cst_6 : f32 to vector<256x128xf32>
    %10 = arith.mulf %9, %6 : vector<256x128xf32>
    %11 = arith.select %8, %6, %10 : vector<256x128xi1>, vector<256x128xf32>
    %12 = arith.truncf %11 : vector<256x128xf32> to vector<256x128xbf16>
    %c0_7 = arith.constant 0 : index
    %c0_8 = arith.constant 0 : index
    %13 = vector.load %arg4[%c0_7, %c0_8] : memref<128x128xbf16, #tpu.memory_space<vmem>>, vector<128x128xbf16>
    %cst_9 = arith.constant dense<0.000000e+00> : vector<256x128xf32>
    %14 = tpu.matmul %12, %13, %cst_9 {dimension_numbers = #tpu.dot_dimension_numbers<[1], [0], [0], [1], [0, 0, 1, 1], [], []>} : vector<256x128xbf16>, vector<128x128xbf16>, vector<256x128xf32> -> vector<256x128xf32>
    %c0_10 = arith.constant 0 : index
    %c0_11 = arith.constant 0 : index
    %15 = vector.load %arg5[%c0_10, %c0_11] : memref<1x128xf32, #tpu.memory_space<vmem>>, vector<1x128xf32>
    %16 = vector.broadcast %15 : vector<1x128xf32> to vector<256x128xf32>
    %17 = arith.addf %14, %16 : vector<256x128xf32>
    %cst_12 = arith.constant 0.000000e+00 : f32
    %18 = vector.broadcast %cst_12 : f32 to vector<256x128xf32>
    %19 = arith.cmpf ogt, %17, %18 : vector<256x128xf32>
    %cst_13 = arith.constant 0.00999999977 : f32
    %20 = vector.broadcast %cst_13 : f32 to vector<256x128xf32>
    %21 = arith.mulf %20, %17 : vector<256x128xf32>
    %22 = arith.select %19, %17, %21 : vector<256x128xi1>, vector<256x128xf32>
    %c0_14 = arith.constant 0 : index
    %c0_15 = arith.constant 0 : index
    %23 = vector.load %arg6[%c0_14, %c0_15] : memref<1x128xf32, #tpu.memory_space<vmem>>, vector<1x128xf32>
    %24 = vector.broadcast %23 : vector<1x128xf32> to vector<256x128xf32>
    %25 = arith.mulf %22, %24 : vector<256x128xf32>
    %26 = vector.shape_cast %25 : vector<256x128xf32> to vector<8x32x128xf32>
    %cst_16 = arith.constant dense<0.000000e+00> : vector<8x32xf32>
    %27 = vector.multi_reduction <add>, %26, %cst_16 [2] : vector<8x32x128xf32> to vector<8x32xf32>
    %c0_17 = arith.constant 0 : index
    %c0_18 = arith.constant 0 : index
    %28 = memref.load %arg7[%c0_17, %c0_18] : memref<1x1xf32, #tpu.memory_space<smem>>
    %29 = vector.broadcast %28 : f32 to vector<8x32xf32>
    %30 = arith.addf %27, %29 : vector<8x32xf32>
    %cst_19 = arith.constant 0.000000e+00 : f32
    %31 = vector.broadcast %cst_19 : f32 to vector<8x32xf32>
    %32 = arith.subf %31, %30 : vector<8x32xf32>
    %33 = math.exp %32 : vector<8x32xf32>
    %cst_20 = arith.constant 1.000000e+00 : f32
    %34 = vector.broadcast %cst_20 : f32 to vector<8x32xf32>
    %35 = arith.addf %34, %33 : vector<8x32xf32>
    %cst_21 = arith.constant 1.000000e+00 : f32
    %36 = vector.broadcast %cst_21 : f32 to vector<8x32xf32>
    %37 = arith.divf %36, %35 : vector<8x32xf32>
    %c0_22 = arith.constant 0 : index
    %c0_23 = arith.constant 0 : index
    %38 = vector.load %arg8[%c0_22, %c0_23] : memref<8x32xf32, #tpu.memory_space<vmem>>, vector<8x32xf32>
    tpu.vector_store %arg8[%c0_22, %c0_23], %37 {strides = array<i32>} : memref<8x32xf32, #tpu.memory_space<vmem>>, vector<8x32xf32>,
    return
  }
  func.func @transform_0(%arg0: i32) -> (i32, i32) {
    %c0_i32 = arith.constant 0 : i32
    %c0_i32_0 = arith.constant 0 : i32
    return %arg0, %c0_i32 : i32, i32
  }
  func.func @transform_1(%arg0: i32) -> (i32, i32) {
    %c0_i32 = arith.constant 0 : i32
    %c0_i32_0 = arith.constant 0 : i32
    %c0_i32_1 = arith.constant 0 : i32
    return %c0_i32, %c0_i32_0 : i32, i32
  }
  func.func @transform_2(%arg0: i32) -> (i32, i32) {
    %c0_i32 = arith.constant 0 : i32
    %c0_i32_0 = arith.constant 0 : i32
    %c0_i32_1 = arith.constant 0 : i32
    return %c0_i32, %c0_i32_0 : i32, i32
  }
  func.func @transform_3(%arg0: i32) -> (i32, i32) {
    %c0_i32 = arith.constant 0 : i32
    %c0_i32_0 = arith.constant 0 : i32
    %c0_i32_1 = arith.constant 0 : i32
    return %c0_i32, %c0_i32_0 : i32, i32
  }
  func.func @transform_4(%arg0: i32) -> (i32, i32) {
    %c0_i32 = arith.constant 0 : i32
    %c0_i32_0 = arith.constant 0 : i32
    %c0_i32_1 = arith.constant 0 : i32
    return %c0_i32, %c0_i32_0 : i32, i32
  }
  func.func @transform_5(%arg0: i32) -> (i32, i32) {
    %c0_i32 = arith.constant 0 : i32
    %c0_i32_0 = arith.constant 0 : i32
    %c0_i32_1 = arith.constant 0 : i32
    return %c0_i32, %c0_i32_0 : i32, i32
  }
  func.func @transform_6(%arg0: i32) -> (i32, i32) {
    %c0_i32 = arith.constant 0 : i32
    %c0_i32_0 = arith.constant 0 : i32
    %c0_i32_1 = arith.constant 0 : i32
    return %c0_i32, %c0_i32_0 : i32, i32
  }
  func.func @transform_7(%arg0: i32) -> (i32, i32) {
    %c0_i32 = arith.constant 0 : i32
    %c0_i32_0 = arith.constant 0 : i32
    return %arg0, %c0_i32 : i32, i32
  }
}

</mosaic_0001>

<llo_original>
// kernel: neural_network_forward.1
$region0: #{neural_network_forward.1}
  #allocation0 [shape = 'u32[]', space=smem, size = 0x4, offset = 0x4, fixed_abs, tag = 'smem constant byte address 0x4 - core index']
  #allocation1 [shape = 'u32[144,128]{1,0:T(1,128)}', space=vmem, size = 0x12000, scoped, tag = 'internal scratch']
  #allocation2 [shape = 'f32[1,1]{1,0:T(1,128)S(6)}', space=smem, size = 0x200, scoped, tag = 'scoped memory for neural_network_forward.1']
  %s0 = inlined_call_operand.vmem [shape: f32[512,32], index: 0, kind: input, shape index: {}]
  %s1 = inlined_call_operand.vmem [shape: bf16[32,128], index: 1, kind: input, shape index: {}]
  %s2 = inlined_call_operand.vmem [shape: f32[1,128], index: 2, kind: input, shape index: {}]
  %s3 = inlined_call_operand.vmem [shape: bf16[128,128], index: 3, kind: input, shape index: {}]
  %s4 = inlined_call_operand.vmem [shape: f32[1,128], index: 4, kind: input, shape index: {}]
  %s5 = inlined_call_operand.vmem [shape: f32[1,128], index: 5, kind: input, shape index: {}]
  %s6 = inlined_call_operand.<no memory space> [shape: f32[1,1], index: 6, kind: input, shape index: {}]
  %s7 = inlined_call_operand.vmem [shape: f32[16,32], index: 7, kind: output, shape index: {}]
  %s8 = sld [smem:[#allocation0]]
  $region61: #{neural_network_forward.1} parent=0
    _
  %s10 = ssub.s32 1, %s8
  %s11 = scalar_select 0, %s10, %s8
  %12 = sst [smem:[#allocation2]] %s6
  loop: start=0, step=1, limit=4
  $region2: #{neural_network_forward.1} parent=0 // loop_pre_header
    _
  $region3: #{neural_network_forward.1} parent=0 // loop_header
    %s14 = sphi 0, %s18
    %p15 = scmp.ge.s32.totalorder %s14, 4
    %s24 = sphi 0, %s26
    %s27 = sphi 0, %s24
    %s28 = sphi 0, %s27
    %s44 = sphi 0, %s28
    %s48 = sphi 0, %s48
    %s50 = sphi 0, %s48
    %s51 = sphi 0, %s50
    %s65 = sphi 0, %s51
    %s69 = sphi 0, %s69
    %s71 = sphi 0, %s69
    %s72 = sphi 0, %s71
    %s86 = sphi 0, %s72
    %s90 = sphi 0, %s90
    %s92 = sphi 0, %s90
    %s93 = sphi 0, %s92
    %s107 = sphi 0, %s93
    %s111 = sphi 0, %s111
    %s113 = sphi 0, %s111
    %s114 = sphi 0, %s113
    %s128 = sphi 0, %s114
    %s132 = sphi 0, %s132
    %s134 = sphi 0, %s132
    %s135 = sphi 0, %s134
    %s149 = sphi 0, %s135
    %s153 = sphi 0, %s153
    %s155 = sphi 0, %s153
    %s156 = sphi 0, %s155
    %s170 = sphi 0, %s156
    %s176 = sphi 0, %s178
    %s179 = sphi 0, %s176
    %s180 = sphi 0, %s179
    %s196 = sphi 0, %s180
  $region4: #{neural_network_forward.1} parent=0 // loop_header_branch
    %17 = sbr.rel (%p15) target = $region8
  $region5: #{neural_network_forward.1} parent=0 // loop_body
    %s19 = ssub.s32 %s14, 1
    %s20 = ssub.s32 %s14, 2
    %s21 = sadd.s32 %s14, 1
    %s22 = ssub.s32 %s14, %s21
    %p23 = scmp.eq.s32.totalorder %s22, 0
    %s25 = sadd.s32 %s24, 1
    %s26 = scalar_select %p23, %s24, %s25
    %p29 = pneg %p23
    %p30 = scmp.eq.s32.totalorder %s14, 1
    %p31 = por %p29, %p30
    %p32 = scmp.ne.s32.totalorder %s24, %s27
    %p33 = scmp.eq.s32.totalorder %s14, 0
    %p34 = por %p32, %p33
    %p35 = scmp.ne.s32.totalorder %s24, %s27
    %p36 = scmp.eq.s32.totalorder %s19, 1
    %p37 = por %p35, %p36
    %p38 = scmp.ne.s32.totalorder %s27, %s28
    %p39 = scmp.eq.s32.totalorder %s19, 0
    %p40 = por %p38, %p39
    %p41 = scmp.ne.s32.totalorder %s27, %s28
    %p42 = scmp.eq.s32.totalorder %s20, 1
    %p43 = por %p41, %p42
    %p45 = scmp.ne.s32.totalorder %s28, %s44
    %p46 = scmp.eq.s32.totalorder %s20, 0
    %p47 = por %p45, %p46
    %s49 = sadd.s32 %s48, 1
    %p52 = scmp.eq.s32.totalorder %s14, 1
    %p53 = scmp.ne.s32.totalorder %s48, %s50
    %p54 = scmp.eq.s32.totalorder %s14, 0
    %p55 = por %p53, %p54
    %p56 = scmp.ne.s32.totalorder %s48, %s50
    %p57 = scmp.eq.s32.totalorder %s19, 1
    %p58 = por %p56, %p57
    %p59 = scmp.ne.s32.totalorder %s50, %s51
    %p60 = scmp.eq.s32.totalorder %s19, 0
    %p61 = por %p59, %p60
    %p62 = scmp.ne.s32.totalorder %s50, %s51
    %p63 = scmp.eq.s32.totalorder %s20, 1
    %p64 = por %p62, %p63
    %p66 = scmp.ne.s32.totalorder %s51, %s65
    %p67 = scmp.eq.s32.totalorder %s20, 0
    %p68 = por %p66, %p67
    %s70 = sadd.s32 %s69, 1
    %p73 = scmp.eq.s32.totalorder %s14, 1
    %p74 = scmp.ne.s32.totalorder %s69, %s71
    %p75 = scmp.eq.s32.totalorder %s14, 0
    %p76 = por %p74, %p75
    %p77 = scmp.ne.s32.totalorder %s69, %s71
    %p78 = scmp.eq.s32.totalorder %s19, 1
    %p79 = por %p77, %p78
    %p80 = scmp.ne.s32.totalorder %s71, %s72
    %p81 = scmp.eq.s32.totalorder %s19, 0
    %p82 = por %p80, %p81
    %p83 = scmp.ne.s32.totalorder %s71, %s72
    %p84 = scmp.eq.s32.totalorder %s20, 1
    %p85 = por %p83, %p84
    %p87 = scmp.ne.s32.totalorder %s72, %s86
    %p88 = scmp.eq.s32.totalorder %s20, 0
    %p89 = por %p87, %p88
    %s91 = sadd.s32 %s90, 1
    %p94 = scmp.eq.s32.totalorder %s14, 1
    %p95 = scmp.ne.s32.totalorder %s90, %s92
    %p96 = scmp.eq.s32.totalorder %s14, 0
    %p97 = por %p95, %p96
    %p98 = scmp.ne.s32.totalorder %s90, %s92
    %p99 = scmp.eq.s32.totalorder %s19, 1
    %p100 = por %p98, %p99
    %p101 = scmp.ne.s32.totalorder %s92, %s93
    %p102 = scmp.eq.s32.totalorder %s19, 0
    %p103 = por %p101, %p102
    %p104 = scmp.ne.s32.totalorder %s92, %s93
    %p105 = scmp.eq.s32.totalorder %s20, 1
    %p106 = por %p104, %p105
    %p108 = scmp.ne.s32.totalorder %s93, %s107
    %p109 = scmp.eq.s32.totalorder %s20, 0
    %p110 = por %p108, %p109
    %s112 = sadd.s32 %s111, 1
    %p115 = scmp.eq.s32.totalorder %s14, 1
    %p116 = scmp.ne.s32.totalorder %s111, %s113
    %p117 = scmp.eq.s32.totalorder %s14, 0
    %p118 = por %p116, %p117
    %p119 = scmp.ne.s32.totalorder %s111, %s113
    %p120 = scmp.eq.s32.totalorder %s19, 1
    %p121 = por %p119, %p120
    %p122 = scmp.ne.s32.totalorder %s113, %s114
    %p123 = scmp.eq.s32.totalorder %s19, 0
    %p124 = por %p122, %p123
    %p125 = scmp.ne.s32.totalorder %s113, %s114
    %p126 = scmp.eq.s32.totalorder %s20, 1
    %p127 = por %p125, %p126
    %p129 = scmp.ne.s32.totalorder %s114, %s128
    %p130 = scmp.eq.s32.totalorder %s20, 0
    %p131 = por %p129, %p130
    %s133 = sadd.s32 %s132, 1
    %p136 = scmp.eq.s32.totalorder %s14, 1
    %p137 = scmp.ne.s32.totalorder %s132, %s134
    %p138 = scmp.eq.s32.totalorder %s14, 0
    %p139 = por %p137, %p138
    %p140 = scmp.ne.s32.totalorder %s132, %s134
    %p141 = scmp.eq.s32.totalorder %s19, 1
    %p142 = por %p140, %p141
    %p143 = scmp.ne.s32.totalorder %s134, %s135
    %p144 = scmp.eq.s32.totalorder %s19, 0
    %p145 = por %p143, %p144
    %p146 = scmp.ne.s32.totalorder %s134, %s135
    %p147 = scmp.eq.s32.totalorder %s20, 1
    %p148 = por %p146, %p147
    %p150 = scmp.ne.s32.totalorder %s135, %s149
    %p151 = scmp.eq.s32.totalorder %s20, 0
    %p152 = por %p150, %p151
    %s154 = sadd.s32 %s153, 1
    %p157 = scmp.eq.s32.totalorder %s14, 1
    %p158 = scmp.ne.s32.totalorder %s153, %s155
    %p159 = scmp.eq.s32.totalorder %s14, 0
    %p160 = por %p158, %p159
    %p161 = scmp.ne.s32.totalorder %s153, %s155
    %p162 = scmp.eq.s32.totalorder %s19, 1
    %p163 = por %p161, %p162
    %p164 = scmp.ne.s32.totalorder %s155, %s156
    %p165 = scmp.eq.s32.totalorder %s19, 0
    %p166 = por %p164, %p165
    %p167 = scmp.ne.s32.totalorder %s155, %s156
    %p168 = scmp.eq.s32.totalorder %s20, 1
    %p169 = por %p167, %p168
    %p171 = scmp.ne.s32.totalorder %s156, %s170
    %p172 = scmp.eq.s32.totalorder %s20, 0
    %p173 = por %p171, %p172
    %s174 = ssub.s32 %s14, %s21
    %p175 = scmp.eq.s32.totalorder %s174, 0
    %s177 = sadd.s32 %s176, 1
    %s178 = scalar_select %p175, %s176, %s177
    %p181 = pneg %p175
    %p182 = scmp.eq.s32.totalorder %s14, 1
    %p183 = por %p181, %p182
    %p184 = scmp.ne.s32.totalorder %s176, %s179
    %p185 = scmp.eq.s32.totalorder %s14, 0
    %p186 = por %p184, %p185
    %p187 = scmp.ne.s32.totalorder %s176, %s179
    %p188 = scmp.eq.s32.totalorder %s19, 1
    %p189 = por %p187, %p188
    %p190 = scmp.ne.s32.totalorder %s179, %s180
    %p191 = scmp.eq.s32.totalorder %s19, 0
    %p192 = por %p190, %p191
    %p193 = scmp.ne.s32.totalorder %s179, %s180
    %p194 = scmp.eq.s32.totalorder %s20, 1
    %p195 = por %p193, %p194
    %p197 = scmp.ne.s32.totalorder %s180, %s196
    %p198 = scmp.eq.s32.totalorder %s20, 0
    %p199 = por %p197, %p198
    %p200 = scmp.le.s32.totalorder 1, %s14
    %p201 = scmp.lt.s32.totalorder %s14, 3
    %p202 = pnand %p200, %p201
    %p203 = pneg %p202
    // Predicated region
    $region9: #{neural_network_forward.1} parent=5 // pred_check
      _
    $region10: #{neural_network_forward.1} parent=5 // pred_check_branch
      %205 = sbr.rel (%p202) target = $region12
    $region11: #{neural_network_forward.1} parent=5 // pred_region
      %s206 = ssub.s32 %s14, 1
      // Predicated region
      $region13: #{neural_network_forward.1} parent=11 // pred_check
        %p207 = pneg %p61
      $region14: #{neural_network_forward.1} parent=11 // pred_check_branch
        %209 = sbr.rel (%p207) target = $region16
      $region15: #{neural_network_forward.1} parent=11 // pred_region
        _
      $region16: #{neural_network_forward.1} parent=11 // pred_fallthru
        _
      // Predicated region
      $region17: #{neural_network_forward.1} parent=11 // pred_check
        %p210 = pneg %p82
      $region18: #{neural_network_forward.1} parent=11 // pred_check_branch
        %212 = sbr.rel (%p210) target = $region20
      $region19: #{neural_network_forward.1} parent=11 // pred_region
        _
      $region20: #{neural_network_forward.1} parent=11 // pred_fallthru
        _
      // Predicated region
      $region21: #{neural_network_forward.1} parent=11 // pred_check
        %p213 = pneg %p103
      $region22: #{neural_network_forward.1} parent=11 // pred_check_branch
        %215 = sbr.rel (%p213) target = $region24
      $region23: #{neural_network_forward.1} parent=11 // pred_region
        _
      $region24: #{neural_network_forward.1} parent=11 // pred_fallthru
        _
      // Predicated region
      $region25: #{neural_network_forward.1} parent=11 // pred_check
        %p216 = pneg %p124
      $region26: #{neural_network_forward.1} parent=11 // pred_check_branch
        %218 = sbr.rel (%p216) target = $region28
      $region27: #{neural_network_forward.1} parent=11 // pred_region
        _
      $region28: #{neural_network_forward.1} parent=11 // pred_fallthru
        _
      // Predicated region
      $region29: #{neural_network_forward.1} parent=11 // pred_check
        %p219 = pneg %p145
      $region30: #{neural_network_forward.1} parent=11 // pred_check_branch
        %221 = sbr.rel (%p219) target = $region32
      $region31: #{neural_network_forward.1} parent=11 // pred_region
        _
      $region32: #{neural_network_forward.1} parent=11 // pred_fallthru
        _
      // Predicated region
      $region33: #{neural_network_forward.1} parent=11 // pred_check
        %p222 = pneg %p166
      $region34: #{neural_network_forward.1} parent=11 // pred_check_branch
        %224 = sbr.rel (%p222) target = $region36
      $region35: #{neural_network_forward.1} parent=11 // pred_region
        _
      $region36: #{neural_network_forward.1} parent=11 // pred_fallthru
        _
    $region12: #{neural_network_forward.1} parent=5 // pred_fallthru
      _
    %p225 = scmp.lt.s32.totalorder %s14, 2
    // Predicated region
    $region37: #{neural_network_forward.1} parent=5 // pred_check
      %p226 = pneg %p225
    $region38: #{neural_network_forward.1} parent=5 // pred_check_branch
      %228 = sbr.rel (%p226) target = $region40
    $region39: #{neural_network_forward.1} parent=5 // pred_region
      // Predicated region
      $region41: #{neural_network_forward.1} parent=39 // pred_check
        %p229 = pneg %p34
      $region42: #{neural_network_forward.1} parent=39 // pred_check_branch
        %231 = sbr.rel (%p229) target = $region44
      $region43: #{neural_network_forward.1} parent=39 // pred_region
        %s232 = smul.u32 32, %s14
        %p233 = scmp.lt.s32.totalorder %s232, 63
        %s234 = scalar_select %p233, %s232, 63
        %s235 = smul.addr %s234, 8
        %s236 = scalar_lea.vmem %s0, %s235
        %s237 = smul.u32 32, %s14
      $region44: #{neural_network_forward.1} parent=39 // pred_fallthru
        _
    $region40: #{neural_network_forward.1} parent=5 // pred_fallthru
      _
    %p238 = scmp.le.s32.totalorder 1, %s14
    %p239 = scmp.lt.s32.totalorder %s14, 3
    %p240 = pnand %p238, %p239
    %p241 = pneg %p240
    // Predicated region
    $region45: #{neural_network_forward.1} parent=5 // pred_check
      _
    $region46: #{neural_network_forward.1} parent=5 // pred_check_branch
      %243 = sbr.rel (%p240) target = $region48
    $region47: #{neural_network_forward.1} parent=5 // pred_region
      %s244 = ssub.s32 %s14, 1
      %s245 = smul.u32 32, %s19
      %p246 = scmp.lt.s32.totalorder %s245, 63
      %s247 = scalar_select %p246, %s245, 63
      %s248 = smul.addr %s247, 8
      %s249 = scalar_lea.vmem %s0, %s248
      %p250 = pneg %p40
      %p251 = pneg %p37
      %p252 = pneg %p61
      %p253 = pneg %p58
      %p254 = pneg %p82
      %p255 = pneg %p79
      %p256 = pneg %p103
      %p257 = pneg %p100
      %p258 = pneg %p124
      %p259 = pneg %p121
      %p260 = pneg %p145
      %p261 = pneg %p142
      %p262 = pneg %p166
      %p263 = pneg %p163
      %p264 = pneg %p192
      %p265 = pneg %p189
      %p266 = scmp.lt.s32.totalorder %s19, 1
      %s267 = scalar_select %p266, %s19, 1
      %s268 = smul.addr %s267, 8
      %s269 = scalar_lea.vmem %s7, %s268
      %s270 = smul.u32 32, %s19
      %p271 = scmp.lt.s32.totalorder %s270, 63
      %s272 = scalar_select %p271, %s270, 63
      %s273 = smul.addr %s272, 8
      %s274 = scalar_lea.vmem %s0, %s273
      %s275 = smul.u32 32, %s19
      %p276 = scmp.lt.s32.totalorder %s19, 1
      %s277 = scalar_select %p276, %s19, 1
      %s278 = smul.addr %s277, 8
      %s279 = scalar_lea.vmem %s7, %s278
      %v281 = vld [vmem:[%s274] sm:$0xff]
      %v282 = vld [vmem:[%s274 + $0x8] sm:$0xff]
      %v283 = vld [vmem:[%s274 + $0x10] sm:$0xff]
      %v284 = vld [vmem:[%s274 + $0x18] sm:$0xff]
      %v285 = vld [vmem:[%s274 + $0x20] sm:$0xff]
      %v286 = vld [vmem:[%s274 + $0x28] sm:$0xff]
      %v287 = vld [vmem:[%s274 + $0x30] sm:$0xff]
      %v288 = vld [vmem:[%s274 + $0x38] sm:$0xff]
      %v289 = vld [vmem:[%s274 + $0x40] sm:$0xff]
      %v290 = vld [vmem:[%s274 + $0x48] sm:$0xff]
      %v291 = vld [vmem:[%s274 + $0x50] sm:$0xff]
      %v292 = vld [vmem:[%s274 + $0x58] sm:$0xff]
      %v293 = vld [vmem:[%s274 + $0x60] sm:$0xff]
      %v294 = vld [vmem:[%s274 + $0x68] sm:$0xff]
      %v295 = vld [vmem:[%s274 + $0x70] sm:$0xff]
      %v296 = vld [vmem:[%s274 + $0x78] sm:$0xff]
      %v297 = vld [vmem:[%s274 + $0x80] sm:$0xff]
      %v298 = vld [vmem:[%s274 + $0x88] sm:$0xff]
      %v299 = vld [vmem:[%s274 + $0x90] sm:$0xff]
      %v300 = vld [vmem:[%s274 + $0x98] sm:$0xff]
      %v301 = vld [vmem:[%s274 + $0xa0] sm:$0xff]
      %v302 = vld [vmem:[%s274 + $0xa8] sm:$0xff]
      %v303 = vld [vmem:[%s274 + $0xb0] sm:$0xff]
      %v304 = vld [vmem:[%s274 + $0xb8] sm:$0xff]
      %v305 = vld [vmem:[%s274 + $0xc0] sm:$0xff]
      %v306 = vld [vmem:[%s274 + $0xc8] sm:$0xff]
      %v307 = vld [vmem:[%s274 + $0xd0] sm:$0xff]
      %v308 = vld [vmem:[%s274 + $0xd8] sm:$0xff]
      %v309 = vld [vmem:[%s274 + $0xe0] sm:$0xff]
      %v310 = vld [vmem:[%s274 + $0xe8] sm:$0xff]
      %v311 = vld [vmem:[%s274 + $0xf0] sm:$0xff]
      %v312 = vld [vmem:[%s274 + $0xf8] sm:$0xff]
      %v313 = vpack.c.bf16 %v282, %v281
      %v314 = vpack.c.bf16 %v284, %v283
      %v315 = vpack.c.bf16 %v286, %v285
      %v316 = vpack.c.bf16 %v288, %v287
      %v317 = vpack.c.bf16 %v290, %v289
      %v318 = vpack.c.bf16 %v292, %v291
      %v319 = vpack.c.bf16 %v294, %v293
      %v320 = vpack.c.bf16 %v296, %v295
      %v321 = vpack.c.bf16 %v298, %v297
      %v322 = vpack.c.bf16 %v300, %v299
      %v323 = vpack.c.bf16 %v302, %v301
      %v324 = vpack.c.bf16 %v304, %v303
      %v325 = vpack.c.bf16 %v306, %v305
      %v326 = vpack.c.bf16 %v308, %v307
      %v327 = vpack.c.bf16 %v310, %v309
      %v328 = vpack.c.bf16 %v312, %v311
      %v329 = vld [vmem:[%s1] sm:$0xf]
      %v330 = vld [vmem:[%s1 + $0x4] sm:$0xf]
      %v331 = vld [vmem:[%s1 + $0x8] sm:$0xf]
      %v332 = vld [vmem:[%s1 + $0xc] sm:$0xf]
      %v333 = vld [vmem:[%s2] sm:$0x1]
      %v335 = vlaneseq
      %v336 = vshrl.u32 %v335, 7
      %v337 = vsub.s32 0, %v336
      %v338 = vrot.slane %v333, %v337
      %v344 = vunpack.c.l.b16 %v329
      %v345 = vunpack.c.l.b16 %v330
      %v346 = vunpack.c.l.b16 %v331
      %v347 = vunpack.c.l.b16 %v332
      %v348 = vpack.c.b16 %v345, %v344
      %v349 = vpack.c.b16 %v347, %v346
      %vm352 = vcmask 261120
      %v354 = vsel %vm352, %v313, 0
      %v357 = vsel %vm352, %v314, 0
      %v360 = vsel %vm352, %v315, 0
      %v363 = vsel %vm352, %v316, 0
      %v366 = vsel %vm352, %v317, 0
      %v369 = vsel %vm352, %v318, 0
      %v372 = vsel %vm352, %v319, 0
      %v375 = vsel %vm352, %v320, 0
      %v378 = vsel %vm352, %v321, 0
      %v381 = vsel %vm352, %v322, 0
      %v384 = vsel %vm352, %v323, 0
      %v387 = vsel %vm352, %v324, 0
      %v390 = vsel %vm352, %v325, 0
      %v393 = vsel %vm352, %v326, 0
      %v396 = vsel %vm352, %v327, 0
      %v399 = vsel %vm352, %v328, 0
      %401 = vmatprep.subr.bf16.mxu0 0
      %402 = vmatpush1.bf16.msra.mxu0 %v348
      %403 = vmatprep.subr.bf16.mxu0 0
      %404 = vmatpush1.bf16.msra.mxu0 %v349
      %405 = vmatprep.subr.bf16.mxu0 0
      %406 = vmatpush1.bf16.msra.mxu0 0
      %407 = vmatprep.subr.bf16.mxu0 0
      %408 = vmatpush1.bf16.msra.mxu0 0
      %409 = vmatprep.subr.bf16.mxu0 0
      %410 = vmatpush1.bf16.msra.mxu0 0
      %411 = vmatprep.subr.bf16.mxu0 0
      %412 = vmatpush1.bf16.msra.mxu0 0
      %413 = vmatprep.subr.bf16.mxu0 0
      %414 = vmatpush1.bf16.msra.mxu0 0
      %415 = vmatprep.subr.bf16.mxu0 0
      %416 = vmatpush1.bf16.msra.mxu0 0
      %417 = vmatprep.subr.bf16.mxu0 0
      %418 = vmatpush1.bf16.msra.mxu0 0
      %419 = vmatprep.subr.bf16.mxu0 0
      %420 = vmatpush1.bf16.msra.mxu0 0
      %421 = vmatprep.subr.bf16.mxu0 0
      %422 = vmatpush1.bf16.msra.mxu0 0
      %423 = vmatprep.subr.bf16.mxu0 0
      %424 = vmatpush1.bf16.msra.mxu0 0
      %425 = vmatprep.subr.bf16.mxu0 0
      %426 = vmatpush1.bf16.msra.mxu0 0
      %427 = vmatprep.subr.bf16.mxu0 0
      %428 = vmatpush1.bf16.msra.mxu0 0
      %429 = vmatprep.subr.bf16.mxu0 0
      %430 = vmatpush1.bf16.msra.mxu0 0
      %431 = vmatprep.subr.bf16.mxu0 0
      %432 = vmatpush1.bf16.msra.mxu0 0
      %433 = vmatprep.mubr.bf16.mxu0 0
      %434 = vmatmul.mubr.bf16.gmra.mrb[0].mxu0 %v354
      %v435 = vpop.f32.mrb[0].mxu0
      %v436 = vadd.f32 %v338, %v435
      %v437 = vpop.f32.mrb[0].mxu0
      %v438 = vpop.f32.mrb[0].mxu0
      %v439 = vadd.f32 %v338, %v438
      %v440 = vpop.f32.mrb[0].mxu0
      %441 = vmatprep.mubr.bf16.mxu0 0
      %442 = vmatmul.mubr.bf16.gmra.mrb[0].mxu0 %v357
      %v443 = vpop.f32.mrb[0].mxu0
      %v444 = vadd.f32 %v338, %v443
      %v445 = vpop.f32.mrb[0].mxu0
      %v446 = vpop.f32.mrb[0].mxu0
      %v447 = vadd.f32 %v338, %v446
      %v448 = vpop.f32.mrb[0].mxu0
      %449 = vmatprep.mubr.bf16.mxu0 0
      %450 = vmatmul.mubr.bf16.gmra.mrb[0].mxu0 %v360
      %v451 = vpop.f32.mrb[0].mxu0
      %v452 = vadd.f32 %v338, %v451
      %v453 = vpop.f32.mrb[0].mxu0
      %v454 = vpop.f32.mrb[0].mxu0
      %v455 = vadd.f32 %v338, %v454
      %v456 = vpop.f32.mrb[0].mxu0
      %457 = vmatprep.mubr.bf16.mxu0 0
      %458 = vmatmul.mubr.bf16.gmra.mrb[0].mxu0 %v363
      %v459 = vpop.f32.mrb[0].mxu0
      %v460 = vadd.f32 %v338, %v459
      %v461 = vpop.f32.mrb[0].mxu0
      %v462 = vpop.f32.mrb[0].mxu0
      %v463 = vadd.f32 %v338, %v462
      %v464 = vpop.f32.mrb[0].mxu0
      %465 = vmatprep.mubr.bf16.mxu0 0
      %466 = vmatmul.mubr.bf16.gmra.mrb[0].mxu0 %v366
      %v467 = vpop.f32.mrb[0].mxu0
      %v468 = vadd.f32 %v338, %v467
      %v469 = vpop.f32.mrb[0].mxu0
      %v470 = vpop.f32.mrb[0].mxu0
      %v471 = vadd.f32 %v338, %v470
      %v472 = vpop.f32.mrb[0].mxu0
      %473 = vmatprep.mubr.bf16.mxu0 0
      %474 = vmatmul.mubr.bf16.gmra.mrb[0].mxu0 %v369
      %v475 = vpop.f32.mrb[0].mxu0
      %v476 = vadd.f32 %v338, %v475
      %v477 = vpop.f32.mrb[0].mxu0
      %v478 = vpop.f32.mrb[0].mxu0
      %v479 = vadd.f32 %v338, %v478
      %v480 = vpop.f32.mrb[0].mxu0
      %481 = vmatprep.mubr.bf16.mxu0 0
      %482 = vmatmul.mubr.bf16.gmra.mrb[0].mxu0 %v372
      %v483 = vpop.f32.mrb[0].mxu0
      %v484 = vadd.f32 %v338, %v483
      %v485 = vpop.f32.mrb[0].mxu0
      %v486 = vpop.f32.mrb[0].mxu0
      %v487 = vadd.f32 %v338, %v486
      %v488 = vpop.f32.mrb[0].mxu0
      %489 = vmatprep.mubr.bf16.mxu0 0
      %490 = vmatmul.mubr.bf16.gmra.mrb[0].mxu0 %v375
      %v491 = vpop.f32.mrb[0].mxu0
      %v492 = vadd.f32 %v338, %v491
      %v493 = vpop.f32.mrb[0].mxu0
      %v494 = vpop.f32.mrb[0].mxu0
      %v495 = vadd.f32 %v338, %v494
      %v496 = vpop.f32.mrb[0].mxu0
      %497 = vmatprep.mubr.bf16.mxu0 0
      %498 = vmatmul.mubr.bf16.gmra.mrb[0].mxu0 %v378
      %v499 = vpop.f32.mrb[0].mxu0
      %v500 = vadd.f32 %v338, %v499
      %v501 = vpop.f32.mrb[0].mxu0
      %v502 = vpop.f32.mrb[0].mxu0
      %v503 = vadd.f32 %v338, %v502
      %v504 = vpop.f32.mrb[0].mxu0
      %505 = vmatprep.mubr.bf16.mxu0 0
      %506 = vmatmul.mubr.bf16.gmra.mrb[0].mxu0 %v381
      %v507 = vpop.f32.mrb[0].mxu0
      %v508 = vadd.f32 %v338, %v507
      %v509 = vpop.f32.mrb[0].mxu0
      %v510 = vpop.f32.mrb[0].mxu0
      %v511 = vadd.f32 %v338, %v510
      %v512 = vpop.f32.mrb[0].mxu0
      %513 = vmatprep.mubr.bf16.mxu0 0
      %514 = vmatmul.mubr.bf16.gmra.mrb[0].mxu0 %v384
      %v515 = vpop.f32.mrb[0].mxu0
      %v516 = vadd.f32 %v338, %v515
      %v517 = vpop.f32.mrb[0].mxu0
      %v518 = vpop.f32.mrb[0].mxu0
      %v519 = vadd.f32 %v338, %v518
      %v520 = vpop.f32.mrb[0].mxu0
      %521 = vmatprep.mubr.bf16.mxu0 0
      %522 = vmatmul.mubr.bf16.gmra.mrb[0].mxu0 %v387
      %v523 = vpop.f32.mrb[0].mxu0
      %v524 = vadd.f32 %v338, %v523
      %v525 = vpop.f32.mrb[0].mxu0
      %v526 = vpop.f32.mrb[0].mxu0
      %v527 = vadd.f32 %v338, %v526
      %v528 = vpop.f32.mrb[0].mxu0
      %529 = vmatprep.mubr.bf16.mxu0 0
      %530 = vmatmul.mubr.bf16.gmra.mrb[0].mxu0 %v390
      %v531 = vpop.f32.mrb[0].mxu0
      %v532 = vadd.f32 %v338, %v531
      %v533 = vpop.f32.mrb[0].mxu0
      %v534 = vpop.f32.mrb[0].mxu0
      %v535 = vadd.f32 %v338, %v534
      %v536 = vpop.f32.mrb[0].mxu0
      %537 = vmatprep.mubr.bf16.mxu0 0
      %538 = vmatmul.mubr.bf16.gmra.mrb[0].mxu0 %v393
      %v539 = vpop.f32.mrb[0].mxu0
      %v540 = vadd.f32 %v338, %v539
      %v541 = vpop.f32.mrb[0].mxu0
      %v542 = vpop.f32.mrb[0].mxu0
      %v543 = vadd.f32 %v338, %v542
      %v544 = vpop.f32.mrb[0].mxu0
      %545 = vmatprep.mubr.bf16.mxu0 0
      %546 = vmatmul.mubr.bf16.gmra.mrb[0].mxu0 %v396
      %v547 = vpop.f32.mrb[0].mxu0
      %v548 = vadd.f32 %v338, %v547
      %v549 = vpop.f32.mrb[0].mxu0
      %v550 = vpop.f32.mrb[0].mxu0
      %v551 = vadd.f32 %v338, %v550
      %v552 = vpop.f32.mrb[0].mxu0
      %553 = vmatprep.mubr.bf16.mxu0 0
      %554 = vmatmul.mubr.bf16.gmra.mrb[0].mxu0 %v399
      %v555 = vpop.f32.mrb[0].mxu0
      %v556 = vadd.f32 %v338, %v555
      %v557 = vpop.f32.mrb[0].mxu0
      %v558 = vpop.f32.mrb[0].mxu0
      %v559 = vadd.f32 %v338, %v558
      %v560 = vpop.f32.mrb[0].mxu0
      %561 = vdwg.mxu0
      %vm562 = vcmp.gt.f32.partialorder %v436, 0.0
      %vm563 = vcmp.gt.f32.partialorder %v439, 0.0
      %vm564 = vcmp.gt.f32.partialorder %v444, 0.0
      %vm565 = vcmp.gt.f32.partialorder %v447, 0.0
      %vm566 = vcmp.gt.f32.partialorder %v452, 0.0
      %vm567 = vcmp.gt.f32.partialorder %v455, 0.0
      %vm568 = vcmp.gt.f32.partialorder %v460, 0.0
      %vm569 = vcmp.gt.f32.partialorder %v463, 0.0
      %vm570 = vcmp.gt.f32.partialorder %v468, 0.0
      %vm571 = vcmp.gt.f32.partialorder %v471, 0.0
      %vm572 = vcmp.gt.f32.partialorder %v476, 0.0
      %vm573 = vcmp.gt.f32.partialorder %v479, 0.0
      %vm574 = vcmp.gt.f32.partialorder %v484, 0.0
      %vm575 = vcmp.gt.f32.partialorder %v487, 0.0
      %vm576 = vcmp.gt.f32.partialorder %v492, 0.0
      %vm577 = vcmp.gt.f32.partialorder %v495, 0.0
      %vm578 = vcmp.gt.f32.partialorder %v500, 0.0
      %vm579 = vcmp.gt.f32.partialorder %v503, 0.0
      %vm580 = vcmp.gt.f32.partialorder %v508, 0.0
      %vm581 = vcmp.gt.f32.partialorder %v511, 0.0
      %vm582 = vcmp.gt.f32.partialorder %v516, 0.0
      %vm583 = vcmp.gt.f32.partialorder %v519, 0.0
      %vm584 = vcmp.gt.f32.partialorder %v524, 0.0
      %vm585 = vcmp.gt.f32.partialorder %v527, 0.0
      %vm586 = vcmp.gt.f32.partialorder %v532, 0.0
      %vm587 = vcmp.gt.f32.partialorder %v535, 0.0
      %vm588 = vcmp.gt.f32.partialorder %v540, 0.0
      %vm589 = vcmp.gt.f32.partialorder %v543, 0.0
      %vm590 = vcmp.gt.f32.partialorder %v548, 0.0
      %vm591 = vcmp.gt.f32.partialorder %v551, 0.0
      %vm592 = vcmp.gt.f32.partialorder %v556, 0.0
      %vm593 = vcmp.gt.f32.partialorder %v559, 0.0
      %v594 = vmul.f32 %v436, 0.01
      %v595 = vmul.f32 %v439, 0.01
      %v596 = vmul.f32 %v444, 0.01
      %v597 = vmul.f32 %v447, 0.01
      %v598 = vmul.f32 %v452, 0.01
      %v599 = vmul.f32 %v455, 0.01
      %v600 = vmul.f32 %v460, 0.01
      %v601 = vmul.f32 %v463, 0.01
      %v602 = vmul.f32 %v468, 0.01
      %v603 = vmul.f32 %v471, 0.01
      %v604 = vmul.f32 %v476, 0.01
      %v605 = vmul.f32 %v479, 0.01
      %v606 = vmul.f32 %v484, 0.01
      %v607 = vmul.f32 %v487, 0.01
      %v608 = vmul.f32 %v492, 0.01
      %v609 = vmul.f32 %v495, 0.01
      %v610 = vmul.f32 %v500, 0.01
      %v611 = vmul.f32 %v503, 0.01
      %v612 = vmul.f32 %v508, 0.01
      %v613 = vmul.f32 %v511, 0.01
      %v614 = vmul.f32 %v516, 0.01
      %v615 = vmul.f32 %v519, 0.01
      %v616 = vmul.f32 %v524, 0.01
      %v617 = vmul.f32 %v527, 0.01
      %v618 = vmul.f32 %v532, 0.01
      %v619 = vmul.f32 %v535, 0.01
      %v620 = vmul.f32 %v540, 0.01
      %v621 = vmul.f32 %v543, 0.01
      %v622 = vmul.f32 %v548, 0.01
      %v623 = vmul.f32 %v551, 0.01
      %v624 = vmul.f32 %v556, 0.01
      %v625 = vmul.f32 %v559, 0.01
      %v626 = vsel %vm562, %v436, %v594
      %v627 = vsel %vm563, %v439, %v595
      %v628 = vsel %vm564, %v444, %v596
      %v629 = vsel %vm565, %v447, %v597
      %v630 = vsel %vm566, %v452, %v598
      %v631 = vsel %vm567, %v455, %v599
      %v632 = vsel %vm568, %v460, %v600
      %v633 = vsel %vm569, %v463, %v601
      %v634 = vsel %vm570, %v468, %v602
      %v635 = vsel %vm571, %v471, %v603
      %v636 = vsel %vm572, %v476, %v604
      %v637 = vsel %vm573, %v479, %v605
      %v638 = vsel %vm574, %v484, %v606
      %v639 = vsel %vm575, %v487, %v607
      %v640 = vsel %vm576, %v492, %v608
      %v641 = vsel %vm577, %v495, %v609
      %v642 = vsel %vm578, %v500, %v610
      %v643 = vsel %vm579, %v503, %v611
      %v644 = vsel %vm580, %v508, %v612
      %v645 = vsel %vm581, %v511, %v613
      %v646 = vsel %vm582, %v516, %v614
      %v647 = vsel %vm583, %v519, %v615
      %v648 = vsel %vm584, %v524, %v616
      %v649 = vsel %vm585, %v527, %v617
      %v650 = vsel %vm586, %v532, %v618
      %v651 = vsel %vm587, %v535, %v619
      %v652 = vsel %vm588, %v540, %v620
      %v653 = vsel %vm589, %v543, %v621
      %v654 = vsel %vm590, %v548, %v622
      %v655 = vsel %vm591, %v551, %v623
      %v656 = vsel %vm592, %v556, %v624
      %v657 = vsel %vm593, %v559, %v625
      %v658 = vpack.c.bf16 %v627, %v626
      %v659 = vpack.c.bf16 %v629, %v628
      %v660 = vpack.c.bf16 %v631, %v630
      %v661 = vpack.c.bf16 %v633, %v632
      %v662 = vpack.c.bf16 %v635, %v634
      %v663 = vpack.c.bf16 %v637, %v636
      %v664 = vpack.c.bf16 %v639, %v638
      %v665 = vpack.c.bf16 %v641, %v640
      %v666 = vpack.c.bf16 %v643, %v642
      %v667 = vpack.c.bf16 %v645, %v644
      %v668 = vpack.c.bf16 %v647, %v646
      %v669 = vpack.c.bf16 %v649, %v648
      %v670 = vpack.c.bf16 %v651, %v650
      %v671 = vpack.c.bf16 %v653, %v652
      %v672 = vpack.c.bf16 %v655, %v654
      %v673 = vpack.c.bf16 %v657, %v656
      %v674 = vld [vmem:[%s3] sm:$0xf]
      %v675 = vld [vmem:[%s3 + $0x4] sm:$0xf]
      %v676 = vld [vmem:[%s3 + $0x8] sm:$0xf]
      %v677 = vld [vmem:[%s3 + $0xc] sm:$0xf]
      %v678 = vld [vmem:[%s3 + $0x10] sm:$0xf]
      %v679 = vld [vmem:[%s3 + $0x14] sm:$0xf]
      %v680 = vld [vmem:[%s3 + $0x18] sm:$0xf]
      %v681 = vld [vmem:[%s3 + $0x1c] sm:$0xf]
      %v682 = vld [vmem:[%s3 + $0x20] sm:$0xf]
      %v683 = vld [vmem:[%s3 + $0x24] sm:$0xf]
      %v684 = vld [vmem:[%s3 + $0x28] sm:$0xf]
      %v685 = vld [vmem:[%s3 + $0x2c] sm:$0xf]
      %v686 = vld [vmem:[%s3 + $0x30] sm:$0xf]
      %v687 = vld [vmem:[%s3 + $0x34] sm:$0xf]
      %v688 = vld [vmem:[%s3 + $0x38] sm:$0xf]
      %v689 = vld [vmem:[%s3 + $0x3c] sm:$0xf]
      %v690 = vld [vmem:[%s4] sm:$0x1]
      %v692 = vlaneseq
      %v693 = vshrl.u32 %v692, 7
      %v694 = vsub.s32 0, %v693
      %v695 = vrot.slane %v690, %v694
      %v713 = vunpack.c.l.b16 %v674
      %v714 = vunpack.c.l.b16 %v675
      %v715 = vunpack.c.l.b16 %v676
      %v716 = vunpack.c.l.b16 %v677
      %v717 = vunpack.c.l.b16 %v678
      %v718 = vunpack.c.l.b16 %v679
      %v719 = vunpack.c.l.b16 %v680
      %v720 = vunpack.c.l.b16 %v681
      %v721 = vunpack.c.l.b16 %v682
      %v722 = vunpack.c.l.b16 %v683
      %v723 = vunpack.c.l.b16 %v684
      %v724 = vunpack.c.l.b16 %v685
      %v725 = vunpack.c.l.b16 %v686
      %v726 = vunpack.c.l.b16 %v687
      %v727 = vunpack.c.l.b16 %v688
      %v728 = vunpack.c.l.b16 %v689
      %v729 = vpack.c.b16 %v714, %v713
      %v730 = vpack.c.b16 %v716, %v715
      %v731 = vpack.c.b16 %v718, %v717
      %v732 = vpack.c.b16 %v720, %v719
      %v733 = vpack.c.b16 %v722, %v721
      %v734 = vpack.c.b16 %v724, %v723
      %v735 = vpack.c.b16 %v726, %v725
      %v736 = vpack.c.b16 %v728, %v727
      %745 = vmatprep.subr.bf16.mxu0 0
      %746 = vmatpush1.bf16.msra.mxu0 %v729
      %747 = vmatprep.subr.bf16.mxu0 0
      %748 = vmatpush1.bf16.msra.mxu0 %v730
      %749 = vmatprep.subr.bf16.mxu0 0
      %750 = vmatpush1.bf16.msra.mxu0 %v731
      %751 = vmatprep.subr.bf16.mxu0 0
      %752 = vmatpush1.bf16.msra.mxu0 %v732
      %753 = vmatprep.subr.bf16.mxu0 0
      %754 = vmatpush1.bf16.msra.mxu0 %v733
      %755 = vmatprep.subr.bf16.mxu0 0
      %756 = vmatpush1.bf16.msra.mxu0 %v734
      %757 = vmatprep.subr.bf16.mxu0 0
      %758 = vmatpush1.bf16.msra.mxu0 %v735
      %759 = vmatprep.subr.bf16.mxu0 0
      %760 = vmatpush1.bf16.msra.mxu0 %v736
      %761 = vmatprep.subr.bf16.mxu0 0
      %762 = vmatpush1.bf16.msra.mxu0 0
      %763 = vmatprep.subr.bf16.mxu0 0
      %764 = vmatpush1.bf16.msra.mxu0 0
      %765 = vmatprep.subr.bf16.mxu0 0
      %766 = vmatpush1.bf16.msra.mxu0 0
      %767 = vmatprep.subr.bf16.mxu0 0
      %768 = vmatpush1.bf16.msra.mxu0 0
      %769 = vmatprep.subr.bf16.mxu0 0
      %770 = vmatpush1.bf16.msra.mxu0 0
      %771 = vmatprep.subr.bf16.mxu0 0
      %772 = vmatpush1.bf16.msra.mxu0 0
      %773 = vmatprep.subr.bf16.mxu0 0
      %774 = vmatpush1.bf16.msra.mxu0 0
      %775 = vmatprep.subr.bf16.mxu0 0
      %776 = vmatpush1.bf16.msra.mxu0 0
      %777 = vmatprep.mubr.bf16.mxu0 0
      %778 = vmatmul.mubr.bf16.gmra.mrb[0].mxu0 %v658
      %v779 = vpop.f32.mrb[0].mxu0
      %v780 = vadd.f32 %v695, %v779
      %v781 = vpop.f32.mrb[0].mxu0
      %v782 = vpop.f32.mrb[0].mxu0
      %v783 = vadd.f32 %v695, %v782
      %v784 = vpop.f32.mrb[0].mxu0
      %785 = vmatprep.mubr.bf16.mxu0 0
      %786 = vmatmul.mubr.bf16.gmra.mrb[0].mxu0 %v659
      %v787 = vpop.f32.mrb[0].mxu0
      %v788 = vadd.f32 %v695, %v787
      %v789 = vpop.f32.mrb[0].mxu0
      %v790 = vpop.f32.mrb[0].mxu0
      %v791 = vadd.f32 %v695, %v790
      %v792 = vpop.f32.mrb[0].mxu0
      %793 = vmatprep.mubr.bf16.mxu0 0
      %794 = vmatmul.mubr.bf16.gmra.mrb[0].mxu0 %v660
      %v795 = vpop.f32.mrb[0].mxu0
      %v796 = vadd.f32 %v695, %v795
      %v797 = vpop.f32.mrb[0].mxu0
      %v798 = vpop.f32.mrb[0].mxu0
      %v799 = vadd.f32 %v695, %v798
      %v800 = vpop.f32.mrb[0].mxu0
      %801 = vmatprep.mubr.bf16.mxu0 0
      %802 = vmatmul.mubr.bf16.gmra.mrb[0].mxu0 %v661
      %v803 = vpop.f32.mrb[0].mxu0
      %v804 = vadd.f32 %v695, %v803
      %v805 = vpop.f32.mrb[0].mxu0
      %v806 = vpop.f32.mrb[0].mxu0
      %v807 = vadd.f32 %v695, %v806
      %v808 = vpop.f32.mrb[0].mxu0
      %809 = vmatprep.mubr.bf16.mxu0 0
      %810 = vmatmul.mubr.bf16.gmra.mrb[0].mxu0 %v662
      %v811 = vpop.f32.mrb[0].mxu0
      %v812 = vadd.f32 %v695, %v811
      %v813 = vpop.f32.mrb[0].mxu0
      %v814 = vpop.f32.mrb[0].mxu0
      %v815 = vadd.f32 %v695, %v814
      %v816 = vpop.f32.mrb[0].mxu0
      %817 = vmatprep.mubr.bf16.mxu0 0
      %818 = vmatmul.mubr.bf16.gmra.mrb[0].mxu0 %v663
      %v819 = vpop.f32.mrb[0].mxu0
      %v820 = vadd.f32 %v695, %v819
      %v821 = vpop.f32.mrb[0].mxu0
      %v822 = vpop.f32.mrb[0].mxu0
      %v823 = vadd.f32 %v695, %v822
      %v824 = vpop.f32.mrb[0].mxu0
      %825 = vmatprep.mubr.bf16.mxu0 0
      %826 = vmatmul.mubr.bf16.gmra.mrb[0].mxu0 %v664
      %v827 = vpop.f32.mrb[0].mxu0
      %v828 = vadd.f32 %v695, %v827
      %v829 = vpop.f32.mrb[0].mxu0
      %v830 = vpop.f32.mrb[0].mxu0
      %v831 = vadd.f32 %v695, %v830
      %v832 = vpop.f32.mrb[0].mxu0
      %833 = vmatprep.mubr.bf16.mxu0 0
      %834 = vmatmul.mubr.bf16.gmra.mrb[0].mxu0 %v665
      %v835 = vpop.f32.mrb[0].mxu0
      %v836 = vadd.f32 %v695, %v835
      %v837 = vpop.f32.mrb[0].mxu0
      %v838 = vpop.f32.mrb[0].mxu0
      %v839 = vadd.f32 %v695, %v838
      %v840 = vpop.f32.mrb[0].mxu0
      %841 = vmatprep.mubr.bf16.mxu0 0
      %842 = vmatmul.mubr.bf16.gmra.mrb[0].mxu0 %v666
      %v843 = vpop.f32.mrb[0].mxu0
      %v844 = vadd.f32 %v695, %v843
      %v845 = vpop.f32.mrb[0].mxu0
      %v846 = vpop.f32.mrb[0].mxu0
      %v847 = vadd.f32 %v695, %v846
      %v848 = vpop.f32.mrb[0].mxu0
      %849 = vmatprep.mubr.bf16.mxu0 0
      %850 = vmatmul.mubr.bf16.gmra.mrb[0].mxu0 %v667
      %v851 = vpop.f32.mrb[0].mxu0
      %v852 = vadd.f32 %v695, %v851
      %v853 = vpop.f32.mrb[0].mxu0
      %v854 = vpop.f32.mrb[0].mxu0
      %v855 = vadd.f32 %v695, %v854
      %v856 = vpop.f32.mrb[0].mxu0
      %857 = vmatprep.mubr.bf16.mxu0 0
      %858 = vmatmul.mubr.bf16.gmra.mrb[0].mxu0 %v668
      %v859 = vpop.f32.mrb[0].mxu0
      %v860 = vadd.f32 %v695, %v859
      %v861 = vpop.f32.mrb[0].mxu0
      %v862 = vpop.f32.mrb[0].mxu0
      %v863 = vadd.f32 %v695, %v862
      %v864 = vpop.f32.mrb[0].mxu0
      %865 = vmatprep.mubr.bf16.mxu0 0
      %866 = vmatmul.mubr.bf16.gmra.mrb[0].mxu0 %v669
      %v867 = vpop.f32.mrb[0].mxu0
      %v868 = vadd.f32 %v695, %v867
      %v869 = vpop.f32.mrb[0].mxu0
      %v870 = vpop.f32.mrb[0].mxu0
      %v871 = vadd.f32 %v695, %v870
      %v872 = vpop.f32.mrb[0].mxu0
      %873 = vmatprep.mubr.bf16.mxu0 0
      %874 = vmatmul.mubr.bf16.gmra.mrb[0].mxu0 %v670
      %v875 = vpop.f32.mrb[0].mxu0
      %v876 = vadd.f32 %v695, %v875
      %v877 = vpop.f32.mrb[0].mxu0
      %v878 = vpop.f32.mrb[0].mxu0
      %v879 = vadd.f32 %v695, %v878
      %v880 = vpop.f32.mrb[0].mxu0
      %881 = vmatprep.mubr.bf16.mxu0 0
      %882 = vmatmul.mubr.bf16.gmra.mrb[0].mxu0 %v671
      %v883 = vpop.f32.mrb[0].mxu0
      %v884 = vadd.f32 %v695, %v883
      %v885 = vpop.f32.mrb[0].mxu0
      %v886 = vpop.f32.mrb[0].mxu0
      %v887 = vadd.f32 %v695, %v886
      %v888 = vpop.f32.mrb[0].mxu0
      %889 = vmatprep.mubr.bf16.mxu0 0
      %890 = vmatmul.mubr.bf16.gmra.mrb[0].mxu0 %v672
      %v891 = vpop.f32.mrb[0].mxu0
      %v892 = vadd.f32 %v695, %v891
      %v893 = vpop.f32.mrb[0].mxu0
      %v894 = vpop.f32.mrb[0].mxu0
      %v895 = vadd.f32 %v695, %v894
      %v896 = vpop.f32.mrb[0].mxu0
      %897 = vmatprep.mubr.bf16.mxu0 0
      %898 = vmatmul.mubr.bf16.gmra.mrb[0].mxu0 %v673
      %v899 = vpop.f32.mrb[0].mxu0
      %v900 = vadd.f32 %v695, %v899
      %v901 = vpop.f32.mrb[0].mxu0
      %v902 = vpop.f32.mrb[0].mxu0
      %v903 = vadd.f32 %v695, %v902
      %v904 = vpop.f32.mrb[0].mxu0
      %905 = vdwg.mxu0
      %vm906 = vcmp.gt.f32.partialorder %v780, 0.0
      %vm907 = vcmp.gt.f32.partialorder %v783, 0.0
      %vm908 = vcmp.gt.f32.partialorder %v788, 0.0
      %vm909 = vcmp.gt.f32.partialorder %v791, 0.0
      %vm910 = vcmp.gt.f32.partialorder %v796, 0.0
      %vm911 = vcmp.gt.f32.partialorder %v799, 0.0
      %vm912 = vcmp.gt.f32.partialorder %v804, 0.0
      %vm913 = vcmp.gt.f32.partialorder %v807, 0.0
      %vm914 = vcmp.gt.f32.partialorder %v812, 0.0
      %vm915 = vcmp.gt.f32.partialorder %v815, 0.0
      %vm916 = vcmp.gt.f32.partialorder %v820, 0.0
      %vm917 = vcmp.gt.f32.partialorder %v823, 0.0
      %vm918 = vcmp.gt.f32.partialorder %v828, 0.0
      %vm919 = vcmp.gt.f32.partialorder %v831, 0.0
      %vm920 = vcmp.gt.f32.partialorder %v836, 0.0
      %vm921 = vcmp.gt.f32.partialorder %v839, 0.0
      %vm922 = vcmp.gt.f32.partialorder %v844, 0.0
      %vm923 = vcmp.gt.f32.partialorder %v847, 0.0
      %vm924 = vcmp.gt.f32.partialorder %v852, 0.0
      %vm925 = vcmp.gt.f32.partialorder %v855, 0.0
      %vm926 = vcmp.gt.f32.partialorder %v860, 0.0
      %vm927 = vcmp.gt.f32.partialorder %v863, 0.0
      %vm928 = vcmp.gt.f32.partialorder %v868, 0.0
      %vm929 = vcmp.gt.f32.partialorder %v871, 0.0
      %vm930 = vcmp.gt.f32.partialorder %v876, 0.0
      %vm931 = vcmp.gt.f32.partialorder %v879, 0.0
      %vm932 = vcmp.gt.f32.partialorder %v884, 0.0
      %vm933 = vcmp.gt.f32.partialorder %v887, 0.0
      %vm934 = vcmp.gt.f32.partialorder %v892, 0.0
      %vm935 = vcmp.gt.f32.partialorder %v895, 0.0
      %vm936 = vcmp.gt.f32.partialorder %v900, 0.0
      %vm937 = vcmp.gt.f32.partialorder %v903, 0.0
      %v938 = vmul.f32 %v780, 0.01
      %v939 = vmul.f32 %v783, 0.01
      %v940 = vmul.f32 %v788, 0.01
      %v941 = vmul.f32 %v791, 0.01
      %v942 = vmul.f32 %v796, 0.01
      %v943 = vmul.f32 %v799, 0.01
      %v944 = vmul.f32 %v804, 0.01
      %v945 = vmul.f32 %v807, 0.01
      %v946 = vmul.f32 %v812, 0.01
      %v947 = vmul.f32 %v815, 0.01
      %v948 = vmul.f32 %v820, 0.01
      %v949 = vmul.f32 %v823, 0.01
      %v950 = vmul.f32 %v828, 0.01
      %v951 = vmul.f32 %v831, 0.01
      %v952 = vmul.f32 %v836, 0.01
      %v953 = vmul.f32 %v839, 0.01
      %v954 = vmul.f32 %v844, 0.01
      %v955 = vmul.f32 %v847, 0.01
      %v956 = vmul.f32 %v852, 0.01
      %v957 = vmul.f32 %v855, 0.01
      %v958 = vmul.f32 %v860, 0.01
      %v959 = vmul.f32 %v863, 0.01
      %v960 = vmul.f32 %v868, 0.01
      %v961 = vmul.f32 %v871, 0.01
      %v962 = vmul.f32 %v876, 0.01
      %v963 = vmul.f32 %v879, 0.01
      %v964 = vmul.f32 %v884, 0.01
      %v965 = vmul.f32 %v887, 0.01
      %v966 = vmul.f32 %v892, 0.01
      %v967 = vmul.f32 %v895, 0.01
      %v968 = vmul.f32 %v900, 0.01
      %v969 = vmul.f32 %v903, 0.01
      %v970 = vsel %vm906, %v780, %v938
      %v971 = vsel %vm907, %v783, %v939
      %v972 = vsel %vm908, %v788, %v940
      %v973 = vsel %vm909, %v791, %v941
      %v974 = vsel %vm910, %v796, %v942
      %v975 = vsel %vm911, %v799, %v943
      %v976 = vsel %vm912, %v804, %v944
      %v977 = vsel %vm913, %v807, %v945
      %v978 = vsel %vm914, %v812, %v946
      %v979 = vsel %vm915, %v815, %v947
      %v980 = vsel %vm916, %v820, %v948
      %v981 = vsel %vm917, %v823, %v949
      %v982 = vsel %vm918, %v828, %v950
      %v983 = vsel %vm919, %v831, %v951
      %v984 = vsel %vm920, %v836, %v952
      %v985 = vsel %vm921, %v839, %v953
      %v986 = vsel %vm922, %v844, %v954
      %v987 = vsel %vm923, %v847, %v955
      %v988 = vsel %vm924, %v852, %v956
      %v989 = vsel %vm925, %v855, %v957
      %v990 = vsel %vm926, %v860, %v958
      %v991 = vsel %vm927, %v863, %v959
      %v992 = vsel %vm928, %v868, %v960
      %v993 = vsel %vm929, %v871, %v961
      %v994 = vsel %vm930, %v876, %v962
      %v995 = vsel %vm931, %v879, %v963
      %v996 = vsel %vm932, %v884, %v964
      %v997 = vsel %vm933, %v887, %v965
      %v998 = vsel %vm934, %v892, %v966
      %v999 = vsel %vm935, %v895, %v967
      %v1000 = vsel %vm936, %v900, %v968
      %v1001 = vsel %vm937, %v903, %v969
      %v1002 = vld [vmem:[%s5] sm:$0x1]
      %v1004 = vlaneseq
      %v1005 = vshrl.u32 %v1004, 7
      %v1006 = vsub.s32 0, %v1005
      %v1007 = vrot.slane %v1002, %v1006
      %v1009 = vmul.f32 %v970, %v1007
      %v1010 = vmul.f32 %v971, %v1007
      %v1011 = vmul.f32 %v972, %v1007
      %v1012 = vmul.f32 %v973, %v1007
      %v1013 = vmul.f32 %v974, %v1007
      %v1014 = vmul.f32 %v975, %v1007
      %v1015 = vmul.f32 %v976, %v1007
      %v1016 = vmul.f32 %v977, %v1007
      %v1017 = vmul.f32 %v978, %v1007
      %v1018 = vmul.f32 %v979, %v1007
      %v1019 = vmul.f32 %v980, %v1007
      %v1020 = vmul.f32 %v981, %v1007
      %v1021 = vmul.f32 %v982, %v1007
      %v1022 = vmul.f32 %v983, %v1007
      %v1023 = vmul.f32 %v984, %v1007
      %v1024 = vmul.f32 %v985, %v1007
      %v1025 = vmul.f32 %v986, %v1007
      %v1026 = vmul.f32 %v987, %v1007
      %v1027 = vmul.f32 %v988, %v1007
      %v1028 = vmul.f32 %v989, %v1007
      %v1029 = vmul.f32 %v990, %v1007
      %v1030 = vmul.f32 %v991, %v1007
      %v1031 = vmul.f32 %v992, %v1007
      %v1032 = vmul.f32 %v993, %v1007
      %v1033 = vmul.f32 %v994, %v1007
      %v1034 = vmul.f32 %v995, %v1007
      %v1035 = vmul.f32 %v996, %v1007
      %v1036 = vmul.f32 %v997, %v1007
      %v1037 = vmul.f32 %v998, %v1007
      %v1038 = vmul.f32 %v999, %v1007
      %v1039 = vmul.f32 %v1000, %v1007
      %v1040 = vmul.f32 %v1001, %v1007
      %1041 = vadd.xlane.f32.xlu0 %v1009
      %v1042 = vpop.xlane.xlu0 %1041
      %1043 = vadd.xlane.f32.xlu0 %v1010
      %v1044 = vpop.xlane.xlu0 %1043
      %1045 = vadd.xlane.f32.xlu0 %v1011
      %v1046 = vpop.xlane.xlu0 %1045
      %1047 = vadd.xlane.f32.xlu0 %v1012
      %v1048 = vpop.xlane.xlu0 %1047
      %1049 = vadd.xlane.f32.xlu0 %v1013
      %v1050 = vpop.xlane.xlu0 %1049
      %1051 = vadd.xlane.f32.xlu0 %v1014
      %v1052 = vpop.xlane.xlu0 %1051
      %1053 = vadd.xlane.f32.xlu0 %v1015
      %v1054 = vpop.xlane.xlu0 %1053
      %1055 = vadd.xlane.f32.xlu0 %v1016
      %v1056 = vpop.xlane.xlu0 %1055
      %1057 = vadd.xlane.f32.xlu0 %v1017
      %v1058 = vpop.xlane.xlu0 %1057
      %1059 = vadd.xlane.f32.xlu0 %v1018
      %v1060 = vpop.xlane.xlu0 %1059
      %1061 = vadd.xlane.f32.xlu0 %v1019
      %v1062 = vpop.xlane.xlu0 %1061
      %1063 = vadd.xlane.f32.xlu0 %v1020
      %v1064 = vpop.xlane.xlu0 %1063
      %1065 = vadd.xlane.f32.xlu0 %v1021
      %v1066 = vpop.xlane.xlu0 %1065
      %1067 = vadd.xlane.f32.xlu0 %v1022
      %v1068 = vpop.xlane.xlu0 %1067
      %1069 = vadd.xlane.f32.xlu0 %v1023
      %v1070 = vpop.xlane.xlu0 %1069
      %1071 = vadd.xlane.f32.xlu0 %v1024
      %v1072 = vpop.xlane.xlu0 %1071
      %1073 = vadd.xlane.f32.xlu0 %v1025
      %v1074 = vpop.xlane.xlu0 %1073
      %1075 = vadd.xlane.f32.xlu0 %v1026
      %v1076 = vpop.xlane.xlu0 %1075
      %1077 = vadd.xlane.f32.xlu0 %v1027
      %v1078 = vpop.xlane.xlu0 %1077
      %1079 = vadd.xlane.f32.xlu0 %v1028
      %v1080 = vpop.xlane.xlu0 %1079
      %1081 = vadd.xlane.f32.xlu0 %v1029
      %v1082 = vpop.xlane.xlu0 %1081
      %1083 = vadd.xlane.f32.xlu0 %v1030
      %v1084 = vpop.xlane.xlu0 %1083
      %1085 = vadd.xlane.f32.xlu0 %v1031
      %v1086 = vpop.xlane.xlu0 %1085
      %1087 = vadd.xlane.f32.xlu0 %v1032
      %v1088 = vpop.xlane.xlu0 %1087
      %1089 = vadd.xlane.f32.xlu0 %v1033
      %v1090 = vpop.xlane.xlu0 %1089
      %1091 = vadd.xlane.f32.xlu0 %v1034
      %v1092 = vpop.xlane.xlu0 %1091
      %1093 = vadd.xlane.f32.xlu0 %v1035
      %v1094 = vpop.xlane.xlu0 %1093
      %1095 = vadd.xlane.f32.xlu0 %v1036
      %v1096 = vpop.xlane.xlu0 %1095
      %1097 = vadd.xlane.f32.xlu0 %v1037
      %v1098 = vpop.xlane.xlu0 %1097
      %1099 = vadd.xlane.f32.xlu0 %v1038
      %v1100 = vpop.xlane.xlu0 %1099
      %1101 = vadd.xlane.f32.xlu0 %v1039
      %v1102 = vpop.xlane.xlu0 %1101
      %1103 = vadd.xlane.f32.xlu0 %v1040
      %v1104 = vpop.xlane.xlu0 %1103
      %s1105 = sld [smem:[#allocation2]]
      %v1106 = vstv %s1105
      %v1107 = vadd.f32 %v1042, %v1106
      %v1108 = vadd.f32 %v1044, %v1106
      %v1109 = vadd.f32 %v1046, %v1106
      %v1110 = vadd.f32 %v1048, %v1106
      %v1111 = vadd.f32 %v1050, %v1106
      %v1112 = vadd.f32 %v1052, %v1106
      %v1113 = vadd.f32 %v1054, %v1106
      %v1114 = vadd.f32 %v1056, %v1106
      %v1115 = vadd.f32 %v1058, %v1106
      %v1116 = vadd.f32 %v1060, %v1106
      %v1117 = vadd.f32 %v1062, %v1106
      %v1118 = vadd.f32 %v1064, %v1106
      %v1119 = vadd.f32 %v1066, %v1106
      %v1120 = vadd.f32 %v1068, %v1106
      %v1121 = vadd.f32 %v1070, %v1106
      %v1122 = vadd.f32 %v1072, %v1106
      %v1123 = vadd.f32 %v1074, %v1106
      %v1124 = vadd.f32 %v1076, %v1106
      %v1125 = vadd.f32 %v1078, %v1106
      %v1126 = vadd.f32 %v1080, %v1106
      %v1127 = vadd.f32 %v1082, %v1106
      %v1128 = vadd.f32 %v1084, %v1106
      %v1129 = vadd.f32 %v1086, %v1106
      %v1130 = vadd.f32 %v1088, %v1106
      %v1131 = vadd.f32 %v1090, %v1106
      %v1132 = vadd.f32 %v1092, %v1106
      %v1133 = vadd.f32 %v1094, %v1106
      %v1134 = vadd.f32 %v1096, %v1106
      %v1135 = vadd.f32 %v1098, %v1106
      %v1136 = vadd.f32 %v1100, %v1106
      %v1137 = vadd.f32 %v1102, %v1106
      %v1138 = vadd.f32 %v1104, %v1106
      %v1139 = vsub.f32 0.0, %v1107
      %v1140 = vsub.f32 0.0, %v1108
      %v1141 = vsub.f32 0.0, %v1109
      %v1142 = vsub.f32 0.0, %v1110
      %v1143 = vsub.f32 0.0, %v1111
      %v1144 = vsub.f32 0.0, %v1112
      %v1145 = vsub.f32 0.0, %v1113
      %v1146 = vsub.f32 0.0, %v1114
      %v1147 = vsub.f32 0.0, %v1115
      %v1148 = vsub.f32 0.0, %v1116
      %v1149 = vsub.f32 0.0, %v1117
      %v1150 = vsub.f32 0.0, %v1118
      %v1151 = vsub.f32 0.0, %v1119
      %v1152 = vsub.f32 0.0, %v1120
      %v1153 = vsub.f32 0.0, %v1121
      %v1154 = vsub.f32 0.0, %v1122
      %v1155 = vsub.f32 0.0, %v1123
      %v1156 = vsub.f32 0.0, %v1124
      %v1157 = vsub.f32 0.0, %v1125
      %v1158 = vsub.f32 0.0, %v1126
      %v1159 = vsub.f32 0.0, %v1127
      %v1160 = vsub.f32 0.0, %v1128
      %v1161 = vsub.f32 0.0, %v1129
      %v1162 = vsub.f32 0.0, %v1130
      %v1163 = vsub.f32 0.0, %v1131
      %v1164 = vsub.f32 0.0, %v1132
      %v1165 = vsub.f32 0.0, %v1133
      %v1166 = vsub.f32 0.0, %v1134
      %v1167 = vsub.f32 0.0, %v1135
      %v1168 = vsub.f32 0.0, %v1136
      %v1169 = vsub.f32 0.0, %v1137
      %v1170 = vsub.f32 0.0, %v1138
      %v1171 = vmul.f32 %v1139, 1.442695
      %v1172 = vpow.pop %v1171
      %v1173 = vmul.f32 %v1140, 1.442695
      %v1174 = vpow.pop %v1173
      %v1175 = vmul.f32 %v1141, 1.442695
      %v1176 = vpow.pop %v1175
      %v1177 = vmul.f32 %v1142, 1.442695
      %v1178 = vpow.pop %v1177
      %v1179 = vmul.f32 %v1143, 1.442695
      %v1180 = vpow.pop %v1179
      %v1181 = vmul.f32 %v1144, 1.442695
      %v1182 = vpow.pop %v1181
      %v1183 = vmul.f32 %v1145, 1.442695
      %v1184 = vpow.pop %v1183
      %v1185 = vmul.f32 %v1146, 1.442695
      %v1186 = vpow.pop %v1185
      %v1187 = vmul.f32 %v1147, 1.442695
      %v1188 = vpow.pop %v1187
      %v1189 = vmul.f32 %v1148, 1.442695
      %v1190 = vpow.pop %v1189
      %v1191 = vmul.f32 %v1149, 1.442695
      %v1192 = vpow.pop %v1191
      %v1193 = vmul.f32 %v1150, 1.442695
      %v1194 = vpow.pop %v1193
      %v1195 = vmul.f32 %v1151, 1.442695
      %v1196 = vpow.pop %v1195
      %v1197 = vmul.f32 %v1152, 1.442695
      %v1198 = vpow.pop %v1197
      %v1199 = vmul.f32 %v1153, 1.442695
      %v1200 = vpow.pop %v1199
      %v1201 = vmul.f32 %v1154, 1.442695
      %v1202 = vpow.pop %v1201
      %v1203 = vmul.f32 %v1155, 1.442695
      %v1204 = vpow.pop %v1203
      %v1205 = vmul.f32 %v1156, 1.442695
      %v1206 = vpow.pop %v1205
      %v1207 = vmul.f32 %v1157, 1.442695
      %v1208 = vpow.pop %v1207
      %v1209 = vmul.f32 %v1158, 1.442695
      %v1210 = vpow.pop %v1209
      %v1211 = vmul.f32 %v1159, 1.442695
      %v1212 = vpow.pop %v1211
      %v1213 = vmul.f32 %v1160, 1.442695
      %v1214 = vpow.pop %v1213
      %v1215 = vmul.f32 %v1161, 1.442695
      %v1216 = vpow.pop %v1215
      %v1217 = vmul.f32 %v1162, 1.442695
      %v1218 = vpow.pop %v1217
      %v1219 = vmul.f32 %v1163, 1.442695
      %v1220 = vpow.pop %v1219
      %v1221 = vmul.f32 %v1164, 1.442695
      %v1222 = vpow.pop %v1221
      %v1223 = vmul.f32 %v1165, 1.442695
      %v1224 = vpow.pop %v1223
      %v1225 = vmul.f32 %v1166, 1.442695
      %v1226 = vpow.pop %v1225
      %v1227 = vmul.f32 %v1167, 1.442695
      %v1228 = vpow.pop %v1227
      %v1229 = vmul.f32 %v1168, 1.442695
      %v1230 = vpow.pop %v1229
      %v1231 = vmul.f32 %v1169, 1.442695
      %v1232 = vpow.pop %v1231
      %v1233 = vmul.f32 %v1170, 1.442695
      %v1234 = vpow.pop %v1233
      %v1235 = vadd.f32 %v1172, 1.0
      %v1236 = vadd.f32 %v1174, 1.0
      %v1237 = vadd.f32 %v1176, 1.0
      %v1238 = vadd.f32 %v1178, 1.0
      %v1239 = vadd.f32 %v1180, 1.0
      %v1240 = vadd.f32 %v1182, 1.0
      %v1241 = vadd.f32 %v1184, 1.0
      %v1242 = vadd.f32 %v1186, 1.0
      %v1243 = vadd.f32 %v1188, 1.0
      %v1244 = vadd.f32 %v1190, 1.0
      %v1245 = vadd.f32 %v1192, 1.0
      %v1246 = vadd.f32 %v1194, 1.0
      %v1247 = vadd.f32 %v1196, 1.0
      %v1248 = vadd.f32 %v1198, 1.0
      %v1249 = vadd.f32 %v1200, 1.0
      %v1250 = vadd.f32 %v1202, 1.0
      %v1251 = vadd.f32 %v1204, 1.0
      %v1252 = vadd.f32 %v1206, 1.0
      %v1253 = vadd.f32 %v1208, 1.0
      %v1254 = vadd.f32 %v1210, 1.0
      %v1255 = vadd.f32 %v1212, 1.0
      %v1256 = vadd.f32 %v1214, 1.0
      %v1257 = vadd.f32 %v1216, 1.0
      %v1258 = vadd.f32 %v1218, 1.0
      %v1259 = vadd.f32 %v1220, 1.0
      %v1260 = vadd.f32 %v1222, 1.0
      %v1261 = vadd.f32 %v1224, 1.0
      %v1262 = vadd.f32 %v1226, 1.0
      %v1263 = vadd.f32 %v1228, 1.0
      %v1264 = vadd.f32 %v1230, 1.0
      %v1265 = vadd.f32 %v1232, 1.0
      %v1266 = vadd.f32 %v1234, 1.0
      %v1267 = vrcp.pop %v1235
      %v1268 = vmul.f32 1.0, %v1267
      %v1269 = vrcp.pop %v1236
      %v1270 = vmul.f32 1.0, %v1269
      %v1271 = vrcp.pop %v1237
      %v1272 = vmul.f32 1.0, %v1271
      %v1273 = vrcp.pop %v1238
      %v1274 = vmul.f32 1.0, %v1273
      %v1275 = vrcp.pop %v1239
      %v1276 = vmul.f32 1.0, %v1275
      %v1277 = vrcp.pop %v1240
      %v1278 = vmul.f32 1.0, %v1277
      %v1279 = vrcp.pop %v1241
      %v1280 = vmul.f32 1.0, %v1279
      %v1281 = vrcp.pop %v1242
      %v1282 = vmul.f32 1.0, %v1281
      %v1283 = vrcp.pop %v1243
      %v1284 = vmul.f32 1.0, %v1283
      %v1285 = vrcp.pop %v1244
      %v1286 = vmul.f32 1.0, %v1285
      %v1287 = vrcp.pop %v1245
      %v1288 = vmul.f32 1.0, %v1287
      %v1289 = vrcp.pop %v1246
      %v1290 = vmul.f32 1.0, %v1289
      %v1291 = vrcp.pop %v1247
      %v1292 = vmul.f32 1.0, %v1291
      %v1293 = vrcp.pop %v1248
      %v1294 = vmul.f32 1.0, %v1293
      %v1295 = vrcp.pop %v1249
      %v1296 = vmul.f32 1.0, %v1295
      %v1297 = vrcp.pop %v1250
      %v1298 = vmul.f32 1.0, %v1297
      %v1299 = vrcp.pop %v1251
      %v1300 = vmul.f32 1.0, %v1299
      %v1301 = vrcp.pop %v1252
      %v1302 = vmul.f32 1.0, %v1301
      %v1303 = vrcp.pop %v1253
      %v1304 = vmul.f32 1.0, %v1303
      %v1305 = vrcp.pop %v1254
      %v1306 = vmul.f32 1.0, %v1305
      %v1307 = vrcp.pop %v1255
      %v1308 = vmul.f32 1.0, %v1307
      %v1309 = vrcp.pop %v1256
      %v1310 = vmul.f32 1.0, %v1309
      %v1311 = vrcp.pop %v1257
      %v1312 = vmul.f32 1.0, %v1311
      %v1313 = vrcp.pop %v1258
      %v1314 = vmul.f32 1.0, %v1313
      %v1315 = vrcp.pop %v1259
      %v1316 = vmul.f32 1.0, %v1315
      %v1317 = vrcp.pop %v1260
      %v1318 = vmul.f32 1.0, %v1317
      %v1319 = vrcp.pop %v1261
      %v1320 = vmul.f32 1.0, %v1319
      %v1321 = vrcp.pop %v1262
      %v1322 = vmul.f32 1.0, %v1321
      %v1323 = vrcp.pop %v1263
      %v1324 = vmul.f32 1.0, %v1323
      %v1325 = vrcp.pop %v1264
      %v1326 = vmul.f32 1.0, %v1325
      %v1327 = vrcp.pop %v1265
      %v1328 = vmul.f32 1.0, %v1327
      %v1329 = vrcp.pop %v1266
      %v1330 = vmul.f32 1.0, %v1329
      %v1363 = vlaneseq
      %v1364 = vand.u32 %v1363, 127
      %v1365 = vlaneseq
      %v1366 = vshrl.u32 %v1365, 7
      %v1367 = vsub.s32 %v1364, %v1366
      %v1368 = vrot.slane %v1268, %v1367
      %v1369 = vadd.s32 %v1364, 4294967288
      %v1370 = vlaneseq
      %v1371 = vshrl.u32 %v1370, 7
      %v1372 = vsub.s32 %v1369, %v1371
      %v1373 = vrot.slane %v1270, %v1372
      %vm1374 = vcmask 130112
      %v1375 = vsel %vm1374, %v1373, %v1368
      %v1376 = vadd.s32 %v1364, 4294967280
      %v1377 = vlaneseq
      %v1378 = vshrl.u32 %v1377, 7
      %v1379 = vsub.s32 %v1376, %v1378
      %v1380 = vrot.slane %v1272, %v1379
      %vm1381 = vcmask 195712
      %v1382 = vsel %vm1381, %v1380, %v1375
      %v1383 = vadd.s32 %v1364, 4294967272
      %v1384 = vlaneseq
      %v1385 = vshrl.u32 %v1384, 7
      %v1386 = vsub.s32 %v1383, %v1385
      %v1387 = vrot.slane %v1274, %v1386
      %vm1388 = vcmask 261312
      %v1389 = vsel %vm1388, %v1387, %v1382
      %v1390 = vlaneseq
      %v1391 = vshrl.u32 %v1390, 7
      %v1392 = vsub.s32 %v1364, %v1391
      %v1393 = vrot.slane %v1276, %v1392
      %v1394 = vlaneseq
      %v1395 = vshrl.u32 %v1394, 7
      %v1396 = vsub.s32 %v1369, %v1395
      %v1397 = vrot.slane %v1278, %v1396
      %v1398 = vsel %vm1374, %v1397, %v1393
      %v1399 = vlaneseq
      %v1400 = vshrl.u32 %v1399, 7
      %v1401 = vsub.s32 %v1376, %v1400
      %v1402 = vrot.slane %v1280, %v1401
      %v1403 = vsel %vm1381, %v1402, %v1398
      %v1404 = vlaneseq
      %v1405 = vshrl.u32 %v1404, 7
      %v1406 = vsub.s32 %v1383, %v1405
      %v1407 = vrot.slane %v1282, %v1406
      %v1408 = vsel %vm1388, %v1407, %v1403
      %v1409 = vlaneseq
      %v1410 = vshrl.u32 %v1409, 7
      %v1411 = vsub.s32 %v1364, %v1410
      %v1412 = vrot.slane %v1284, %v1411
      %v1413 = vlaneseq
      %v1414 = vshrl.u32 %v1413, 7
      %v1415 = vsub.s32 %v1369, %v1414
      %v1416 = vrot.slane %v1286, %v1415
      %v1417 = vsel %vm1374, %v1416, %v1412
      %v1418 = vlaneseq
      %v1419 = vshrl.u32 %v1418, 7
      %v1420 = vsub.s32 %v1376, %v1419
      %v1421 = vrot.slane %v1288, %v1420
      %v1422 = vsel %vm1381, %v1421, %v1417
      %v1423 = vlaneseq
      %v1424 = vshrl.u32 %v1423, 7
      %v1425 = vsub.s32 %v1383, %v1424
      %v1426 = vrot.slane %v1290, %v1425
      %v1427 = vsel %vm1388, %v1426, %v1422
      %v1428 = vlaneseq
      %v1429 = vshrl.u32 %v1428, 7
      %v1430 = vsub.s32 %v1364, %v1429
      %v1431 = vrot.slane %v1292, %v1430
      %v1432 = vlaneseq
      %v1433 = vshrl.u32 %v1432, 7
      %v1434 = vsub.s32 %v1369, %v1433
      %v1435 = vrot.slane %v1294, %v1434
      %v1436 = vsel %vm1374, %v1435, %v1431
      %v1437 = vlaneseq
      %v1438 = vshrl.u32 %v1437, 7
      %v1439 = vsub.s32 %v1376, %v1438
      %v1440 = vrot.slane %v1296, %v1439
      %v1441 = vsel %vm1381, %v1440, %v1436
      %v1442 = vlaneseq
      %v1443 = vshrl.u32 %v1442, 7
      %v1444 = vsub.s32 %v1383, %v1443
      %v1445 = vrot.slane %v1298, %v1444
      %v1446 = vsel %vm1388, %v1445, %v1441
      %v1447 = vlaneseq
      %v1448 = vshrl.u32 %v1447, 7
      %v1449 = vsub.s32 %v1364, %v1448
      %v1450 = vrot.slane %v1300, %v1449
      %v1451 = vlaneseq
      %v1452 = vshrl.u32 %v1451, 7
      %v1453 = vsub.s32 %v1369, %v1452
      %v1454 = vrot.slane %v1302, %v1453
      %v1455 = vsel %vm1374, %v1454, %v1450
      %v1456 = vlaneseq
      %v1457 = vshrl.u32 %v1456, 7
      %v1458 = vsub.s32 %v1376, %v1457
      %v1459 = vrot.slane %v1304, %v1458
      %v1460 = vsel %vm1381, %v1459, %v1455
      %v1461 = vlaneseq
      %v1462 = vshrl.u32 %v1461, 7
      %v1463 = vsub.s32 %v1383, %v1462
      %v1464 = vrot.slane %v1306, %v1463
      %v1465 = vsel %vm1388, %v1464, %v1460
      %v1466 = vlaneseq
      %v1467 = vshrl.u32 %v1466, 7
      %v1468 = vsub.s32 %v1364, %v1467
      %v1469 = vrot.slane %v1308, %v1468
      %v1470 = vlaneseq
      %v1471 = vshrl.u32 %v1470, 7
      %v1472 = vsub.s32 %v1369, %v1471
      %v1473 = vrot.slane %v1310, %v1472
      %v1474 = vsel %vm1374, %v1473, %v1469
      %v1475 = vlaneseq
      %v1476 = vshrl.u32 %v1475, 7
      %v1477 = vsub.s32 %v1376, %v1476
      %v1478 = vrot.slane %v1312, %v1477
      %v1479 = vsel %vm1381, %v1478, %v1474
      %v1480 = vlaneseq
      %v1481 = vshrl.u32 %v1480, 7
      %v1482 = vsub.s32 %v1383, %v1481
      %v1483 = vrot.slane %v1314, %v1482
      %v1484 = vsel %vm1388, %v1483, %v1479
      %v1485 = vlaneseq
      %v1486 = vshrl.u32 %v1485, 7
      %v1487 = vsub.s32 %v1364, %v1486
      %v1488 = vrot.slane %v1316, %v1487
      %v1489 = vlaneseq
      %v1490 = vshrl.u32 %v1489, 7
      %v1491 = vsub.s32 %v1369, %v1490
      %v1492 = vrot.slane %v1318, %v1491
      %v1493 = vsel %vm1374, %v1492, %v1488
      %v1494 = vlaneseq
      %v1495 = vshrl.u32 %v1494, 7
      %v1496 = vsub.s32 %v1376, %v1495
      %v1497 = vrot.slane %v1320, %v1496
      %v1498 = vsel %vm1381, %v1497, %v1493
      %v1499 = vlaneseq
      %v1500 = vshrl.u32 %v1499, 7
      %v1501 = vsub.s32 %v1383, %v1500
      %v1502 = vrot.slane %v1322, %v1501
      %v1503 = vsel %vm1388, %v1502, %v1498
      %v1504 = vlaneseq
      %v1505 = vshrl.u32 %v1504, 7
      %v1506 = vsub.s32 %v1364, %v1505
      %v1507 = vrot.slane %v1324, %v1506
      %v1508 = vlaneseq
      %v1509 = vshrl.u32 %v1508, 7
      %v1510 = vsub.s32 %v1369, %v1509
      %v1511 = vrot.slane %v1326, %v1510
      %v1512 = vsel %vm1374, %v1511, %v1507
      %v1513 = vlaneseq
      %v1514 = vshrl.u32 %v1513, 7
      %v1515 = vsub.s32 %v1376, %v1514
      %v1516 = vrot.slane %v1328, %v1515
      %v1517 = vsel %vm1381, %v1516, %v1512
      %v1518 = vlaneseq
      %v1519 = vshrl.u32 %v1518, 7
      %v1520 = vsub.s32 %v1383, %v1519
      %v1521 = vrot.slane %v1330, %v1520
      %v1522 = vsel %vm1388, %v1521, %v1517
      %vm1523 = vcmask 1041409
      %v1524 = vsel %vm1523, %v1408, %v1389
      %vm1525 = vcmask 1042434
      %v1526 = vsel %vm1525, %v1427, %v1524
      %vm1527 = vcmask 1043459
      %v1528 = vsel %vm1527, %v1446, %v1526
      %vm1529 = vcmask 1044484
      %v1530 = vsel %vm1529, %v1465, %v1528
      %vm1531 = vcmask 1045509
      %v1532 = vsel %vm1531, %v1484, %v1530
      %vm1533 = vcmask 1046534
      %v1534 = vsel %vm1533, %v1503, %v1532
      %vm1535 = vcmask 1047559
      %v1536 = vsel %vm1535, %v1522, %v1534
      %1538 = vst.msk [vmem:[%s279] sm:$0xff] %vm352, %v1536
      %p1539 = scmp.lt.s32.totalorder %s19, 1
      %s1540 = scalar_select %p1539, %s19, 1
      %s1541 = smul.addr %s1540, 8
      %s1542 = scalar_lea.vmem %s7, %s1541
      // Predicated region
      $region49: #{neural_network_forward.1} parent=47 // pred_check
        %p1543 = pneg %p189
      $region50: #{neural_network_forward.1} parent=47 // pred_check_branch
        %1545 = sbr.rel (%p1543) target = $region52
      $region51: #{neural_network_forward.1} parent=47 // pred_region
        _
      $region52: #{neural_network_forward.1} parent=47 // pred_fallthru
        _
    $region48: #{neural_network_forward.1} parent=5 // pred_fallthru
      _
    %p1546 = scmp.le.s32.totalorder 2, %s14
    // Predicated region
    $region53: #{neural_network_forward.1} parent=5 // pred_check
      %p1547 = pneg %p1546
    $region54: #{neural_network_forward.1} parent=5 // pred_check_branch
      %1549 = sbr.rel (%p1547) target = $region56
    $region55: #{neural_network_forward.1} parent=5 // pred_region
      %s1550 = ssub.s32 %s14, 2
      // Predicated region
      $region57: #{neural_network_forward.1} parent=55 // pred_check
        %p1551 = pneg %p195
      $region58: #{neural_network_forward.1} parent=55 // pred_check_branch
        %1553 = sbr.rel (%p1551) target = $region60
      $region59: #{neural_network_forward.1} parent=55 // pred_region
        %p1554 = scmp.lt.s32.totalorder %s20, 1
        %s1555 = scalar_select %p1554, %s20, 1
        %s1556 = smul.addr %s1555, 8
        %s1557 = scalar_lea.vmem %s7, %s1556
      $region60: #{neural_network_forward.1} parent=55 // pred_fallthru
        _
    $region56: #{neural_network_forward.1} parent=5 // pred_fallthru
      _
  $region6: #{neural_network_forward.1} parent=0 // loop_footer
    %s18 = sadd.s32 1, %s14
  $region7: #{neural_network_forward.1} parent=0 // loop_footer_branch
    %13 = sbr.rel target = $region3
  $region8: #{neural_network_forward.1} parent=0 // loop_exit
    _

</llo_original>
